<compile_context>
chip_gen: v5e
topology: v5e:2x2
jax: 0.10.0
libtpu: 0.0.40
codegen_flags: <defaults>
</compile_context>

<pallas_src>
import math
import functools

import jax
import jax.numpy as jnp
from jax import lax
from jax.experimental import pallas as pl
from jax.experimental.pallas import tpu as pltpu


MASK_VALUE = -1e30   # large finite negative instead of -inf


# ---------------------------------------------------------------------------
# math helpers
# ---------------------------------------------------------------------------

def _layernorm(x, g, b, eps=1e-5):
    mu = jnp.mean(x, axis=-1, keepdims=True)
    var = jnp.mean((x - mu) ** 2, axis=-1, keepdims=True)
    return (x - mu) * lax.rsqrt(var + eps) * g + b


def _gelu_tanh(x):
    # TODO(synk): torch nn.GELU default is exact-erf; tanh-approximate GELU is used
    # here so the transcendental lowers to the EUP (difference <~1e-3, within test tol).
    c = math.sqrt(2.0 / math.pi)
    return 0.5 * x * (1.0 + jnp.tanh(c * (x + 0.044715 * x * x * x)))


# ---------------------------------------------------------------------------
# Kernel A: LayerNorm1 + fused QKV projection (per (batch, seq-tile))
# ---------------------------------------------------------------------------

def ln_qkv_kernel(x_ref, g_ref, b_ref, w_ref, bias_ref, q_ref, k_ref, v_ref):
    d = q_ref.shape[-1]
    h = _layernorm(x_ref[...], g_ref[...], b_ref[...])            # f32 statistics
    qkv = jnp.dot(h.astype(jnp.bfloat16), w_ref[...],             # bf16 x bf16 -> f32
                  preferred_element_type=jnp.float32) + bias_ref[...]
    q_ref[...] = qkv[:, 0 * d:1 * d].astype(q_ref.dtype)
    k_ref[...] = qkv[:, 1 * d:2 * d].astype(k_ref.dtype)
    v_ref[...] = qkv[:, 2 * d:3 * d].astype(v_ref.dtype)


# ---------------------------------------------------------------------------
# Kernel B: causal flash attention, heads batched, online softmax over kv tiles
# ---------------------------------------------------------------------------

def flash_attn_kernel(q_ref, k_ref, v_ref, o_ref, m_sc, l_sc, acc_sc):
    qi = pl.program_id(1)
    ki = pl.program_id(2)
    tq = q_ref.shape[1]
    tkv = k_ref.shape[1]

    @pl.when(ki == 0)
    def _init():
        m_sc[...] = jnp.full(m_sc.shape, MASK_VALUE, jnp.float32)
        l_sc[...] = jnp.zeros(l_sc.shape, jnp.float32)
        acc_sc[...] = jnp.zeros(acc_sc.shape, jnp.float32)

    # kv tiles strictly above the diagonal are fully masked -> skip the compute
    @pl.when(ki <= qi)
    def _accumulate():
        # q is already scaled by 1/sqrt(hd) (folded into the projection weights)
        s = jnp.einsum('hqd,hkd->hqk', q_ref[...], k_ref[...],
                       preferred_element_type=jnp.float32)         # (H, TQ, TKV)
        q_pos = qi * tq + lax.broadcasted_iota(jnp.int32, s.shape, 1)
        k_pos = ki * tkv + lax.broadcasted_iota(jnp.int32, s.shape, 2)
        s = jnp.where(k_pos > q_pos, MASK_VALUE, s)

        m_prev = m_sc[...]
        m_new = jnp.maximum(m_prev, jnp.max(s, axis=-1, keepdims=True))
        alpha = jnp.exp(m_prev - m_new)
        p = jnp.exp(s - m_new)
        l_sc[...] = alpha * l_sc[...] + jnp.sum(p, axis=-1, keepdims=True)
        acc_sc[...] = alpha * acc_sc[...] + jnp.einsum(
            'hqk,hkd->hqd', p.astype(v_ref.dtype), v_ref[...],
            preferred_element_type=jnp.float32)
        m_sc[...] = m_new

    @pl.when(ki == pl.num_programs(2) - 1)
    def _finalize():
        inv_l = pl.reciprocal(l_sc[...], approx=True)               # EUP slot
        o_ref[...] = (acc_sc[...] * inv_l).astype(o_ref.dtype)


# ---------------------------------------------------------------------------
# Kernel C: MHA out-projection + residual + LayerNorm2 + MLP + residual
# ---------------------------------------------------------------------------

def proj_mlp_kernel(attn_ref, x_ref, wo_ref, bo_ref, g_ref, b_ref,
                    w1_ref, b1_ref, w2_ref, b2_ref, o_ref):
    n_heads = attn_ref.shape[0]
    x = x_ref[...]                                                  # (TL, D) f32

    # out-projection as sum of per-head (TL,hd)@(hd,D) dots (leading-axis slices only)
    proj = jnp.dot(attn_ref[0], wo_ref[0], preferred_element_type=jnp.float32)
    for h in range(1, n_heads):
        proj = proj + jnp.dot(attn_ref[h], wo_ref[h],
                              preferred_element_type=jnp.float32)
    x1 = x + proj + bo_ref[...]

    h2 = _layernorm(x1, g_ref[...], b_ref[...])
    mid = jnp.dot(h2.astype(jnp.bfloat16), w1_ref[...],
                  preferred_element_type=jnp.float32) + b1_ref[...]
    mid = _gelu_tanh(mid)
    mlp = jnp.dot(mid.astype(jnp.bfloat16), w2_ref[...],
                  preferred_element_type=jnp.float32) + b2_ref[...]
    o_ref[...] = (x1 + mlp).astype(o_ref.dtype)


# ---------------------------------------------------------------------------
# wrapper
# ---------------------------------------------------------------------------

def _const_spec(a):
    nd = a.ndim
    return pl.BlockSpec(a.shape, lambda *_: (0,) * nd)


def _bytes(shape, dtype):
    n = 1
    for s in shape:
        n *= int(s)
    return n * jnp.dtype(dtype).itemsize


def _vmem_limit(block_bytes, scratch_bytes=0):
    est = 2 * block_bytes + scratch_bytes        # double-buffered pipeline blocks
    est = est + est // 2 + (4 << 20)             # compiler headroom
    return int(min(max(est, 16 << 20), 100 << 20))


def _pick_seq_tile(L, target):
    t = min(target, L)
    if L % t == 0 and (t % 8 == 0 or t == L):
        return t
    return L                                      # fall back to untiled sequence


def transformer_block(x, params, n_heads, seq_tile=256):
    """(B, L, D) -> (B, L, D) forward of TransformerBlock."""
    (ln1g, ln1b, ln2g, ln2b, wqkv, bqkv,
     wq, bq, wk, bk, wv, bv, wo, bo, w1, b1, w2, b2) = params

    B, L, D = x.shape
    hd = D // n_heads
    tl = _pick_seq_tile(L, seq_tile)
    n_lt = L // tl
    f32, bf16 = jnp.float32, jnp.bfloat16

    # ---- host-side weight folding ------------------------------------------------
    # q = (ln1(x) @ wqkv_q + bqkv_q) @ wq + bq == ln1(x) @ (wqkv_q@wq) + (bqkv_q@wq + bq)
    # and the 1/sqrt(hd) query scale is folded into the q projection.
    scale = 1.0 / math.sqrt(hd)
    wq_eff = (wqkv[:, 0 * D:1 * D] @ wq) * scale
    bq_eff = (bqkv[:, 0 * D:1 * D] @ wq + bq) * scale
    wk_eff = wqkv[:, 1 * D:2 * D] @ wk
    bk_eff = bqkv[:, 1 * D:2 * D] @ wk + bk
    wv_eff = wqkv[:, 2 * D:3 * D] @ wv
    bv_eff = bqkv[:, 2 * D:3 * D] @ wv + bv
    wqkv_eff = jnp.concatenate([wq_eff, wk_eff, wv_eff], axis=1).astype(bf16)
    bqkv_eff = jnp.concatenate([bq_eff, bk_eff, bv_eff], axis=1).astype(f32)
    wo_h = wo.reshape(n_heads, hd, D).astype(bf16)      # per-head out-proj slabs
    w1_b, w2_b = w1.astype(bf16), w2.astype(bf16)

    # ---- kernel A: LayerNorm1 + fused QKV ------------------------------------------
    a_blocks = (_bytes((tl, D), f32) + _bytes((D, 3 * D), bf16)
                + _bytes((1, 3 * D), f32) + 2 * _bytes((1, D), f32)
                + 3 * _bytes((tl, D), bf16))
    q_f, k_f, v_f = pl.pallas_call(
        ln_qkv_kernel,
        out_shape=tuple(jax.ShapeDtypeStruct((B, L, D), bf16) for _ in range(3)),
        grid_spec=pltpu.PrefetchScalarGridSpec(
            num_scalar_prefetch=0,
            grid=(B, n_lt),
            in_specs=[
                pl.BlockSpec((None, tl, D), lambda b, i: (b, i, 0)),   # squeezed batch
                _const_spec(ln1g), _const_spec(ln1b),
                _const_spec(wqkv_eff), _const_spec(bqkv_eff),
            ],
            out_specs=tuple(pl.BlockSpec((None, tl, D), lambda b, i: (b, i, 0))
                            for _ in range(3)),
        ),
        compiler_params=pltpu.CompilerParams(
            dimension_semantics=("parallel", "parallel"),
            vmem_limit_bytes=_vmem_limit(a_blocks)),
    )(x, ln1g, ln1b, wqkv_eff, bqkv_eff)

    # head-major layout (B, H, L, hd): pure XLA layout plumbing so attention blocks
    # are lane-aligned and the kernel never slices sub-lane head columns.
    def _to_heads(t):
        return jnp.transpose(t.reshape(B, L, n_heads, hd), (0, 2, 1, 3))
    q_h, k_h, v_h = _to_heads(q_f), _to_heads(k_f), _to_heads(v_f)

    # ---- kernel B: causal flash attention --------------------------------------------
    b_blocks = 4 * _bytes((n_heads, tl, hd), bf16)
    b_scratch = 2 * _bytes((n_heads, tl, 1), f32) + _bytes((n_heads, tl, hd), f32)
    attn_h = pl.pallas_call(
        flash_attn_kernel,
        out_shape=jax.ShapeDtypeStruct((B, n_heads, L, hd), bf16),
        grid_spec=pltpu.PrefetchScalarGridSpec(
            num_scalar_prefetch=0,
            grid=(B, n_lt, n_lt),
            in_specs=[
                pl.BlockSpec((None, n_heads, tl, hd), lambda b, qi, ki: (b, 0, qi, 0)),
                pl.BlockSpec((None, n_heads, tl, hd), lambda b, qi, ki: (b, 0, ki, 0)),
                pl.BlockSpec((None, n_heads, tl, hd), lambda b, qi, ki: (b, 0, ki, 0)),
            ],
            out_specs=pl.BlockSpec((None, n_heads, tl, hd),
                                   lambda b, qi, ki: (b, 0, qi, 0)),
            scratch_shapes=[
                pltpu.VMEM((n_heads, tl, 1), f32),      # running max
                pltpu.VMEM((n_heads, tl, 1), f32),      # running denominator
                pltpu.VMEM((n_heads, tl, hd), f32),     # running weighted sum
            ],
        ),
        compiler_params=pltpu.CompilerParams(
            dimension_semantics=("parallel", "parallel", "arbitrary"),
            vmem_limit_bytes=_vmem_limit(b_blocks, b_scratch)),
    )(q_h, k_h, v_h)

    # ---- kernel C: out-projection + residual + LayerNorm2 + MLP + residual -----------
    c_blocks = (_bytes((n_heads, tl, hd), bf16) + 2 * _bytes((tl, D), f32)
                + _bytes((n_heads, hd, D), bf16) + _bytes((D, 4 * D), bf16)
                + _bytes((4 * D, D), bf16) + _bytes((1, 4 * D), f32)
                + 4 * _bytes((1, D), f32))
    out = pl.pallas_call(
        proj_mlp_kernel,
        out_shape=jax.ShapeDtypeStruct((B, L, D), x.dtype),
        grid_spec=pltpu.PrefetchScalarGridSpec(
            num_scalar_prefetch=0,
            grid=(B, n_lt),
            in_specs=[
                pl.BlockSpec((None, n_heads, tl, hd), lambda b, i: (b, 0, i, 0)),
                pl.BlockSpec((None, tl, D), lambda b, i: (b, i, 0)),
                _const_spec(wo_h), _const_spec(bo),
                _const_spec(ln2g), _const_spec(ln2b),
                _const_spec(w1_b), _const_spec(b1),
                _const_spec(w2_b), _const_spec(b2),
            ],
            out_specs=pl.BlockSpec((None, tl, D), lambda b, i: (b, i, 0)),
        ),
        compiler_params=pltpu.CompilerParams(
            dimension_semantics=("parallel", "parallel"),
            vmem_limit_bytes=_vmem_limit(c_blocks)),
    )(attn_h, x, wo_h, bo, ln2g, ln2b, w1_b, b1, w2_b, b2)

    return out


# ---------------------------------------------------------------------------
# pure-JAX f32 reference (mirrors the PyTorch module)
# ---------------------------------------------------------------------------

def transformer_block_ref(x, params, n_heads):
    (ln1g, ln1b, ln2g, ln2b, wqkv, bqkv,
     wq, bq, wk, bk, wv, bv, wo, bo, w1, b1, w2, b2) = params
    B, L, D = x.shape
    hd = D // n_heads

    h = _layernorm(x, ln1g, ln1b)
    qkv = h @ wqkv + bqkv
    q_in, k_in, v_in = jnp.split(qkv, 3, axis=-1)
    q = q_in @ wq + bq
    k = k_in @ wk + bk
    v = v_in @ wv + bv

    qh = jnp.transpose(q.reshape(B, L, n_heads, hd), (0, 2, 1, 3))
    kh = jnp.transpose(k.reshape(B, L, n_heads, hd), (0, 2, 1, 3))
    vh = jnp.transpose(v.reshape(B, L, n_heads, hd), (0, 2, 1, 3))
    s = jnp.einsum('bhqd,bhkd->bhqk', qh, kh) / math.sqrt(hd)
    mask = jnp.triu(jnp.ones((L, L), bool), k=1)
    s = jnp.where(mask, -jnp.inf, s)
    p = jax.nn.softmax(s, axis=-1)
    o = jnp.einsum('bhqk,bhkd->bhqd', p, vh)
    o = jnp.transpose(o, (0, 2, 1, 3)).reshape(B, L, D)
    o = o @ wo + bo

    x = x + o
    h2 = _layernorm(x, ln2g, ln2b)
    mlp = jax.nn.gelu(h2 @ w1 + b1, approximate=False) @ w2 + b2
    return x + mlp


def init_params(key, D):
    ks = jax.random.split(key, 14)
    w = lambda k, shape: jax.random.normal(k, shape, jnp.float32) * 0.05
    ln1g = jnp.ones((1, D), jnp.float32); ln1b = jnp.zeros((1, D), jnp.float32)
    ln2g = jnp.ones((1, D), jnp.float32); ln2b = jnp.zeros((1, D), jnp.float32)
    wqkv = w(ks[0], (D, 3 * D)); bqkv = w(ks[1], (1, 3 * D))
    wq = w(ks[2], (D, D)); bq = w(ks[3], (1, D))
    wk = w(ks[4], (D, D)); bk = w(ks[5], (1, D))
    wv = w(ks[6], (D, D)); bv = w(ks[7], (1, D))
    wo = w(ks[8], (D, D)); bo = w(ks[9], (1, D))
    w1 = w(ks[10], (D, 4 * D)); b1 = w(ks[11], (1, 4 * D))
    w2 = w(ks[12], (4 * D, D)); b2 = w(ks[13], (1, D))
    return [ln1g, ln1b, ln2g, ln2b, wqkv, bqkv,
            wq, bq, wk, bk, wv, bv, wo, bo, w1, b1, w2, b2]


if __name__ == "__main__":
    B, L, D, H = 2, 16, 32, 4          # small test; seq_tile=8 exercises the flash loop

    key = jax.random.PRNGKey(0)
    kx, kp = jax.random.split(key)
    x = jax.random.normal(kx, (B, L, D), jnp.float32)
    params = init_params(kp, D)

    fn = jax.jit(functools.partial(transformer_block, n_heads=H, seq_tile=8))
    out = jax.block_until_ready(fn(x, params))

    ref = jax.block_until_ready(transformer_block_ref(x, params, H))
    assert out.shape == (B, L, D)
    err = float(jnp.max(jnp.abs(out - ref)))
    assert jnp.allclose(out, ref, rtol=2e-2, atol=2e-2), err

    print("KERNEL_OK")
</pallas_src>

<mosaic_0001>
module attributes {stable_mosaic.version = 11 : i64} {
  func.func @ln_qkv_kernel(%arg0: i32, %arg1: i32, %arg2: memref<1x8x32xf32, #tpu.memory_space<vmem>>, %arg3: memref<1x32xf32, #tpu.memory_space<vmem>>, %arg4: memref<1x32xf32, #tpu.memory_space<vmem>>, %arg5: memref<32x96xbf16, #tpu.memory_space<vmem>>, %arg6: memref<1x96xf32, #tpu.memory_space<vmem>>, %arg7: memref<1x8x32xbf16, #tpu.memory_space<vmem>>, %arg8: memref<1x8x32xbf16, #tpu.memory_space<vmem>>, %arg9: memref<1x8x32xbf16, #tpu.memory_space<vmem>>) attributes {dimension_semantics = [#tpu.dimension_semantics<parallel>, #tpu.dimension_semantics<parallel>], iteration_bounds = array<i64: 2, 2>, scalar_prefetch = 0 : i64, scratch_operands = 0 : i64, tpu.core_type = #tpu.core_type<tc>, window_params = [{transform_indices = @transform_0, window_bounds = array<i64: 1, 8, 32>}, {pipeline_mode = #tpu.pipeline_mode<synchronous>, transform_indices = @transform_1, window_bounds = array<i64: 1, 32>}, {pipeline_mode = #tpu.pipeline_mode<synchronous>, transform_indices = @transform_2, window_bounds = array<i64: 1, 32>}, {pipeline_mode = #tpu.pipeline_mode<synchronous>, transform_indices = @transform_3, window_bounds = array<i64: 32, 96>}, {pipeline_mode = #tpu.pipeline_mode<synchronous>, transform_indices = @transform_4, window_bounds = array<i64: 1, 96>}, {transform_indices = @transform_5, window_bounds = array<i64: 1, 8, 32>}, {transform_indices = @transform_6, window_bounds = array<i64: 1, 8, 32>}, {transform_indices = @transform_7, window_bounds = array<i64: 1, 8, 32>}]} {
    %c0 = arith.constant 0 : index
    %c0_0 = arith.constant 0 : index
    %c0_1 = arith.constant 0 : index
    %0 = vector.load %arg2[%c0, %c0_0, %c0_1] : memref<1x8x32xf32, #tpu.memory_space<vmem>>, vector<1x8x32xf32>
    %1 = vector.shape_cast %0 : vector<1x8x32xf32> to vector<8x32xf32>
    %c0_2 = arith.constant 0 : index
    %c0_3 = arith.constant 0 : index
    %2 = vector.load %arg3[%c0_2, %c0_3] : memref<1x32xf32, #tpu.memory_space<vmem>>, vector<1x32xf32>
    %c0_4 = arith.constant 0 : index
    %c0_5 = arith.constant 0 : index
    %3 = vector.load %arg4[%c0_4, %c0_5] : memref<1x32xf32, #tpu.memory_space<vmem>>, vector<1x32xf32>
    %cst = arith.constant dense<0.000000e+00> : vector<8xf32>
    %4 = vector.multi_reduction <add>, %1, %cst [1] : vector<8x32xf32> to vector<8xf32>
    %5 = vector.shape_cast %4 : vector<8xf32> to vector<8x1xf32>
    %cst_6 = arith.constant 3.200000e+01 : f32
    %6 = vector.broadcast %cst_6 : f32 to vector<8x1xf32>
    %7 = arith.divf %5, %6 : vector<8x1xf32>
    %8 = vector.broadcast %7 : vector<8x1xf32> to vector<8x32xf32>
    %9 = arith.subf %1, %8 : vector<8x32xf32>
    %10 = arith.mulf %9, %9 : vector<8x32xf32>
    %cst_7 = arith.constant dense<0.000000e+00> : vector<8xf32>
    %11 = vector.multi_reduction <add>, %10, %cst_7 [1] : vector<8x32xf32> to vector<8xf32>
    %12 = vector.shape_cast %11 : vector<8xf32> to vector<8x1xf32>
    %cst_8 = arith.constant 3.200000e+01 : f32
    %13 = vector.broadcast %cst_8 : f32 to vector<8x1xf32>
    %14 = arith.divf %12, %13 : vector<8x1xf32>
    %15 = vector.broadcast %7 : vector<8x1xf32> to vector<8x32xf32>
    %16 = arith.subf %1, %15 : vector<8x32xf32>
    %cst_9 = arith.constant 9.99999974E-6 : f32
    %17 = vector.broadcast %cst_9 : f32 to vector<8x1xf32>
    %18 = arith.addf %14, %17 : vector<8x1xf32>
    %19 = math.rsqrt %18 : vector<8x1xf32>
    %20 = vector.broadcast %19 : vector<8x1xf32> to vector<8x32xf32>
    %21 = arith.mulf %16, %20 : vector<8x32xf32>
    %22 = vector.broadcast %2 : vector<1x32xf32> to vector<8x32xf32>
    %23 = arith.mulf %21, %22 : vector<8x32xf32>
    %24 = vector.broadcast %3 : vector<1x32xf32> to vector<8x32xf32>
    %25 = arith.addf %23, %24 : vector<8x32xf32>
    %26 = arith.truncf %25 : vector<8x32xf32> to vector<8x32xbf16>
    %c0_10 = arith.constant 0 : index
    %c0_11 = arith.constant 0 : index
    %27 = vector.load %arg5[%c0_10, %c0_11] : memref<32x96xbf16, #tpu.memory_space<vmem>>, vector<32x96xbf16>
    %cst_12 = arith.constant dense<0.000000e+00> : vector<8x96xf32>
    %28 = tpu.matmul %26, %27, %cst_12 {dimension_numbers = #tpu.dot_dimension_numbers<[1], [0], [0], [1], [0, 0, 1, 1], [], []>} : vector<8x32xbf16>, vector<32x96xbf16>, vector<8x96xf32> -> vector<8x96xf32>
    %c0_13 = arith.constant 0 : index
    %c0_14 = arith.constant 0 : index
    %29 = vector.load %arg6[%c0_13, %c0_14] : memref<1x96xf32, #tpu.memory_space<vmem>>, vector<1x96xf32>
    %30 = vector.broadcast %29 : vector<1x96xf32> to vector<8x96xf32>
    %31 = arith.addf %28, %30 : vector<8x96xf32>
    %32 = vector.extract_strided_slice %31 {offsets = [0, 0], sizes = [8, 32], strides = [1, 1]} : vector<8x96xf32> to vector<8x32xf32>
    %33 = arith.truncf %32 : vector<8x32xf32> to vector<8x32xbf16>
    %c0_15 = arith.constant 0 : index
    %c0_16 = arith.constant 0 : index
    %c0_17 = arith.constant 0 : index
    %34 = vector.load %arg7[%c0_15, %c0_16, %c0_17] : memref<1x8x32xbf16, #tpu.memory_space<vmem>>, vector<1x8x32xbf16>
    %35 = vector.shape_cast %34 : vector<1x8x32xbf16> to vector<8x32xbf16>
    %36 = vector.shape_cast %33 : vector<8x32xbf16> to vector<1x8x32xbf16>
    tpu.vector_store %arg7[%c0_15, %c0_16, %c0_17], %36 {strides = array<i32>} : memref<1x8x32xbf16, #tpu.memory_space<vmem>>, vector<1x8x32xbf16>,
    %37 = vector.extract_strided_slice %31 {offsets = [0, 32], sizes = [8, 32], strides = [1, 1]} : vector<8x96xf32> to vector<8x32xf32>
    %38 = arith.truncf %37 : vector<8x32xf32> to vector<8x32xbf16>
    %c0_18 = arith.constant 0 : index
    %c0_19 = arith.constant 0 : index
    %c0_20 = arith.constant 0 : index
    %39 = vector.load %arg8[%c0_18, %c0_19, %c0_20] : memref<1x8x32xbf16, #tpu.memory_space<vmem>>, vector<1x8x32xbf16>
    %40 = vector.shape_cast %39 : vector<1x8x32xbf16> to vector<8x32xbf16>
    %41 = vector.shape_cast %38 : vector<8x32xbf16> to vector<1x8x32xbf16>
    tpu.vector_store %arg8[%c0_18, %c0_19, %c0_20], %41 {strides = array<i32>} : memref<1x8x32xbf16, #tpu.memory_space<vmem>>, vector<1x8x32xbf16>,
    %42 = vector.extract_strided_slice %31 {offsets = [0, 64], sizes = [8, 32], strides = [1, 1]} : vector<8x96xf32> to vector<8x32xf32>
    %43 = arith.truncf %42 : vector<8x32xf32> to vector<8x32xbf16>
    %c0_21 = arith.constant 0 : index
    %c0_22 = arith.constant 0 : index
    %c0_23 = arith.constant 0 : index
    %44 = vector.load %arg9[%c0_21, %c0_22, %c0_23] : memref<1x8x32xbf16, #tpu.memory_space<vmem>>, vector<1x8x32xbf16>
    %45 = vector.shape_cast %44 : vector<1x8x32xbf16> to vector<8x32xbf16>
    %46 = vector.shape_cast %43 : vector<8x32xbf16> to vector<1x8x32xbf16>
    tpu.vector_store %arg9[%c0_21, %c0_22, %c0_23], %46 {strides = array<i32>} : memref<1x8x32xbf16, #tpu.memory_space<vmem>>, vector<1x8x32xbf16>,
    return
  }
  func.func @transform_0(%arg0: i32, %arg1: i32) -> (i32, i32, i32) {
    %c0_i32 = arith.constant 0 : i32
    %c0_i32_0 = arith.constant 0 : i32
    return %arg0, %arg1, %c0_i32 : i32, i32, i32
  }
  func.func @transform_1(%arg0: i32, %arg1: i32) -> (i32, i32) {
    %c0_i32 = arith.constant 0 : i32
    %c0_i32_0 = arith.constant 0 : i32
    %c0_i32_1 = arith.constant 0 : i32
    return %c0_i32, %c0_i32_0 : i32, i32
  }
  func.func @transform_2(%arg0: i32, %arg1: i32) -> (i32, i32) {
    %c0_i32 = arith.constant 0 : i32
    %c0_i32_0 = arith.constant 0 : i32
    %c0_i32_1 = arith.constant 0 : i32
    return %c0_i32, %c0_i32_0 : i32, i32
  }
  func.func @transform_3(%arg0: i32, %arg1: i32) -> (i32, i32) {
    %c0_i32 = arith.constant 0 : i32
    %c0_i32_0 = arith.constant 0 : i32
    %c0_i32_1 = arith.constant 0 : i32
    return %c0_i32, %c0_i32_0 : i32, i32
  }
  func.func @transform_4(%arg0: i32, %arg1: i32) -> (i32, i32) {
    %c0_i32 = arith.constant 0 : i32
    %c0_i32_0 = arith.constant 0 : i32
    %c0_i32_1 = arith.constant 0 : i32
    return %c0_i32, %c0_i32_0 : i32, i32
  }
  func.func @transform_5(%arg0: i32, %arg1: i32) -> (i32, i32, i32) {
    %c0_i32 = arith.constant 0 : i32
    %c0_i32_0 = arith.constant 0 : i32
    return %arg0, %arg1, %c0_i32 : i32, i32, i32
  }
  func.func @transform_6(%arg0: i32, %arg1: i32) -> (i32, i32, i32) {
    %c0_i32 = arith.constant 0 : i32
    %c0_i32_0 = arith.constant 0 : i32
    return %arg0, %arg1, %c0_i32 : i32, i32, i32
  }
  func.func @transform_7(%arg0: i32, %arg1: i32) -> (i32, i32, i32) {
    %c0_i32 = arith.constant 0 : i32
    %c0_i32_0 = arith.constant 0 : i32
    return %arg0, %arg1, %c0_i32 : i32, i32, i32
  }
}

module attributes {stable_mosaic.version = 11 : i64} {
  func.func @flash_attn_kernel(%arg0: i32, %arg1: i32, %arg2: i32, %arg3: memref<1x4x8x8xbf16, #tpu.memory_space<vmem>>, %arg4: memref<1x4x8x8xbf16, #tpu.memory_space<vmem>>, %arg5: memref<1x4x8x8xbf16, #tpu.memory_space<vmem>>, %arg6: memref<1x4x8x8xbf16, #tpu.memory_space<vmem>>, %arg7: memref<4x8x1xf32, #tpu.memory_space<vmem>>, %arg8: memref<4x8x1xf32, #tpu.memory_space<vmem>>, %arg9: memref<4x8x8xf32, #tpu.memory_space<vmem>>) attributes {dimension_semantics = [#tpu.dimension_semantics<parallel>, #tpu.dimension_semantics<parallel>, #tpu.dimension_semantics<arbitrary>], iteration_bounds = array<i64: 2, 2, 2>, scalar_prefetch = 0 : i64, scratch_operands = 3 : i64, tpu.core_type = #tpu.core_type<tc>, window_params = [{transform_indices = @transform_0, window_bounds = array<i64: 1, 4, 8, 8>}, {transform_indices = @transform_1, window_bounds = array<i64: 1, 4, 8, 8>}, {transform_indices = @transform_2, window_bounds = array<i64: 1, 4, 8, 8>}, {transform_indices = @transform_3, window_bounds = array<i64: 1, 4, 8, 8>}]} {
    %c0_i32 = arith.constant 0 : i32
    %0 = arith.cmpi eq, %arg2, %c0_i32 : i32
    %1 = arith.extui %0 : i1 to i32
    %c0_i32_0 = arith.constant 0 : i32
    %2 = arith.cmpi ne, %1, %c0_i32_0 : i32
    scf.if %2 {
      %cst = arith.constant -1.000000e+30 : f32
      %9 = vector.broadcast %cst : f32 to vector<4x8x1xf32>
      %c0 = arith.constant 0 : index
      %c0_3 = arith.constant 0 : index
      %c0_4 = arith.constant 0 : index
      %10 = vector.load %arg7[%c0, %c0_3, %c0_4] : memref<4x8x1xf32, #tpu.memory_space<vmem>>, vector<4x8x1xf32>
      tpu.vector_store %arg7[%c0, %c0_3, %c0_4], %9 {strides = array<i32>} : memref<4x8x1xf32, #tpu.memory_space<vmem>>, vector<4x8x1xf32>,
      %cst_5 = arith.constant 0.000000e+00 : f32
      %11 = vector.broadcast %cst_5 : f32 to vector<4x8x1xf32>
      %c0_6 = arith.constant 0 : index
      %c0_7 = arith.constant 0 : index
      %c0_8 = arith.constant 0 : index
      %12 = vector.load %arg8[%c0_6, %c0_7, %c0_8] : memref<4x8x1xf32, #tpu.memory_space<vmem>>, vector<4x8x1xf32>
      tpu.vector_store %arg8[%c0_6, %c0_7, %c0_8], %11 {strides = array<i32>} : memref<4x8x1xf32, #tpu.memory_space<vmem>>, vector<4x8x1xf32>,
      %cst_9 = arith.constant 0.000000e+00 : f32
      %13 = vector.broadcast %cst_9 : f32 to vector<4x8x8xf32>
      %c0_10 = arith.constant 0 : index
      %c0_11 = arith.constant 0 : index
      %c0_12 = arith.constant 0 : index
      %14 = vector.load %arg9[%c0_10, %c0_11, %c0_12] : memref<4x8x8xf32, #tpu.memory_space<vmem>>, vector<4x8x8xf32>
      tpu.vector_store %arg9[%c0_10, %c0_11, %c0_12], %13 {strides = array<i32>} : memref<4x8x8xf32, #tpu.memory_space<vmem>>, vector<4x8x8xf32>,
    } else {
    }
    %3 = arith.cmpi sle, %arg2, %arg1 : i32
    %4 = arith.extui %3 : i1 to i32
    %c0_i32_1 = arith.constant 0 : i32
    %5 = arith.cmpi ne, %4, %c0_i32_1 : i32
    scf.if %5 {
      %c0 = arith.constant 0 : index
      %c0_3 = arith.constant 0 : index
      %c0_4 = arith.constant 0 : index
      %c0_5 = arith.constant 0 : index
      %9 = vector.load %arg3[%c0, %c0_3, %c0_4, %c0_5] : memref<1x4x8x8xbf16, #tpu.memory_space<vmem>>, vector<1x4x8x8xbf16>
      %10 = vector.shape_cast %9 : vector<1x4x8x8xbf16> to vector<4x8x8xbf16>
      %c0_6 = arith.constant 0 : index
      %c0_7 = arith.constant 0 : index
      %c0_8 = arith.constant 0 : index
      %c0_9 = arith.constant 0 : index
      %11 = vector.load %arg4[%c0_6, %c0_7, %c0_8, %c0_9] : memref<1x4x8x8xbf16, #tpu.memory_space<vmem>>, vector<1x4x8x8xbf16>
      %12 = vector.shape_cast %11 : vector<1x4x8x8xbf16> to vector<4x8x8xbf16>
      "tpu.trace_start"() <{level = 10 : i32, message = "hqd,hkd->hqk"}> : () -> ()
      %cst = arith.constant dense<0.000000e+00> : vector<4x8x8xf32>
      %13 = tpu.matmul %10, %12, %cst {dimension_numbers = #tpu.dot_dimension_numbers<[2], [2], [1], [1], [0, 0, 0, 1, 1, 1], [0], [0]>} : vector<4x8x8xbf16>, vector<4x8x8xbf16>, vector<4x8x8xf32> -> vector<4x8x8xf32>
      "tpu.trace_stop"() : () -> ()
      %c8_i32 = arith.constant 8 : i32
      %14 = arith.muli %arg1, %c8_i32 : i32
      %15 = tpu.iota {dimensions = array<i32: 1>} : vector<4x8x8xi32>
      %16 = vector.broadcast %14 : i32 to vector<4x8x8xi32>
      %17 = arith.addi %16, %15 : vector<4x8x8xi32>
      %c8_i32_10 = arith.constant 8 : i32
      %18 = arith.muli %arg2, %c8_i32_10 : i32
      %19 = tpu.iota {dimensions = array<i32: 2>} : vector<4x8x8xi32>
      %20 = vector.broadcast %18 : i32 to vector<4x8x8xi32>
      %21 = arith.addi %20, %19 : vector<4x8x8xi32>
      %22 = arith.cmpi sgt, %21, %17 : vector<4x8x8xi32>
      %cst_11 = arith.constant -1.000000e+30 : f32
      %23 = vector.broadcast %cst_11 : f32 to vector<4x8x8xf32>
      %24 = arith.select %22, %23, %13 : vector<4x8x8xi1>, vector<4x8x8xf32>
      %c0_12 = arith.constant 0 : index
      %c0_13 = arith.constant 0 : index
      %c0_14 = arith.constant 0 : index
      %25 = vector.load %arg7[%c0_12, %c0_13, %c0_14] : memref<4x8x1xf32, #tpu.memory_space<vmem>>, vector<4x8x1xf32>
      %cst_15 = arith.constant dense<0xFF800000> : vector<4x8xf32>
      %26 = vector.multi_reduction <maximumf>, %24, %cst_15 [2] : vector<4x8x8xf32> to vector<4x8xf32>
      %27 = vector.shape_cast %26 : vector<4x8xf32> to vector<4x8x1xf32>
      %28 = arith.maximumf %25, %27 : vector<4x8x1xf32>
      %29 = arith.subf %25, %28 : vector<4x8x1xf32>
      %30 = math.exp %29 : vector<4x8x1xf32>
      %31 = vector.broadcast %28 : vector<4x8x1xf32> to vector<4x8x8xf32>
      %32 = arith.subf %24, %31 : vector<4x8x8xf32>
      %33 = math.exp %32 : vector<4x8x8xf32>
      %c0_16 = arith.constant 0 : index
      %c0_17 = arith.constant 0 : index
      %c0_18 = arith.constant 0 : index
      %34 = vector.load %arg8[%c0_16, %c0_17, %c0_18] : memref<4x8x1xf32, #tpu.memory_space<vmem>>, vector<4x8x1xf32>
      %35 = arith.mulf %30, %34 : vector<4x8x1xf32>
      %cst_19 = arith.constant dense<0.000000e+00> : vector<4x8xf32>
      %36 = vector.multi_reduction <add>, %33, %cst_19 [2] : vector<4x8x8xf32> to vector<4x8xf32>
      %37 = vector.shape_cast %36 : vector<4x8xf32> to vector<4x8x1xf32>
      %38 = arith.addf %35, %37 : vector<4x8x1xf32>
      %c0_20 = arith.constant 0 : index
      %c0_21 = arith.constant 0 : index
      %c0_22 = arith.constant 0 : index
      %39 = vector.load %arg8[%c0_20, %c0_21, %c0_22] : memref<4x8x1xf32, #tpu.memory_space<vmem>>, vector<4x8x1xf32>
      tpu.vector_store %arg8[%c0_20, %c0_21, %c0_22], %38 {strides = array<i32>} : memref<4x8x1xf32, #tpu.memory_space<vmem>>, vector<4x8x1xf32>,
      %c0_23 = arith.constant 0 : index
      %c0_24 = arith.constant 0 : index
      %c0_25 = arith.constant 0 : index
      %40 = vector.load %arg9[%c0_23, %c0_24, %c0_25] : memref<4x8x8xf32, #tpu.memory_space<vmem>>, vector<4x8x8xf32>
      %41 = vector.broadcast %30 : vector<4x8x1xf32> to vector<4x8x8xf32>
      %42 = arith.mulf %41, %40 : vector<4x8x8xf32>
      %43 = arith.truncf %33 : vector<4x8x8xf32> to vector<4x8x8xbf16>
      %c0_26 = arith.constant 0 : index
      %c0_27 = arith.constant 0 : index
      %c0_28 = arith.constant 0 : index
      %c0_29 = arith.constant 0 : index
      %44 = vector.load %arg5[%c0_26, %c0_27, %c0_28, %c0_29] : memref<1x4x8x8xbf16, #tpu.memory_space<vmem>>, vector<1x4x8x8xbf16>
      %45 = vector.shape_cast %44 : vector<1x4x8x8xbf16> to vector<4x8x8xbf16>
      "tpu.trace_start"() <{level = 10 : i32, message = "hqk,hkd->hqd"}> : () -> ()
      %cst_30 = arith.constant dense<0.000000e+00> : vector<4x8x8xf32>
      %46 = tpu.matmul %43, %45, %cst_30 {dimension_numbers = #tpu.dot_dimension_numbers<[2], [1], [1], [2], [0, 0, 0, 1, 1, 2], [0], [0]>} : vector<4x8x8xbf16>, vector<4x8x8xbf16>, vector<4x8x8xf32> -> vector<4x8x8xf32>
      "tpu.trace_stop"() : () -> ()
      %47 = arith.addf %42, %46 : vector<4x8x8xf32>
      %c0_31 = arith.constant 0 : index
      %c0_32 = arith.constant 0 : index
      %c0_33 = arith.constant 0 : index
      %48 = vector.load %arg9[%c0_31, %c0_32, %c0_33] : memref<4x8x8xf32, #tpu.memory_space<vmem>>, vector<4x8x8xf32>
      tpu.vector_store %arg9[%c0_31, %c0_32, %c0_33], %47 {strides = array<i32>} : memref<4x8x8xf32, #tpu.memory_space<vmem>>, vector<4x8x8xf32>,
      %c0_34 = arith.constant 0 : index
      %c0_35 = arith.constant 0 : index
      %c0_36 = arith.constant 0 : index
      %49 = vector.load %arg7[%c0_34, %c0_35, %c0_36] : memref<4x8x1xf32, #tpu.memory_space<vmem>>, vector<4x8x1xf32>
      tpu.vector_store %arg7[%c0_34, %c0_35, %c0_36], %28 {strides = array<i32>} : memref<4x8x1xf32, #tpu.memory_space<vmem>>, vector<4x8x1xf32>,
    } else {
    }
    %c1_i32 = arith.constant 1 : i32
    %6 = arith.cmpi eq, %arg2, %c1_i32 : i32
    %7 = arith.extui %6 : i1 to i32
    %c0_i32_2 = arith.constant 0 : i32
    %8 = arith.cmpi ne, %7, %c0_i32_2 : i32
    scf.if %8 {
      %c0 = arith.constant 0 : index
      %c0_3 = arith.constant 0 : index
      %c0_4 = arith.constant 0 : index
      %9 = vector.load %arg8[%c0, %c0_3, %c0_4] : memref<4x8x1xf32, #tpu.memory_space<vmem>>, vector<4x8x1xf32>
      %10 = tpu.reciprocal %9 {approx = true} : vector<4x8x1xf32> -> vector<4x8x1xf32>
      %c0_5 = arith.constant 0 : index
      %c0_6 = arith.constant 0 : index
      %c0_7 = arith.constant 0 : index
      %11 = vector.load %arg9[%c0_5, %c0_6, %c0_7] : memref<4x8x8xf32, #tpu.memory_space<vmem>>, vector<4x8x8xf32>
      %12 = vector.broadcast %10 : vector<4x8x1xf32> to vector<4x8x8xf32>
      %13 = arith.mulf %11, %12 : vector<4x8x8xf32>
      %14 = arith.truncf %13 : vector<4x8x8xf32> to vector<4x8x8xbf16>
      %c0_8 = arith.constant 0 : index
      %c0_9 = arith.constant 0 : index
      %c0_10 = arith.constant 0 : index
      %c0_11 = arith.constant 0 : index
      %15 = vector.load %arg6[%c0_8, %c0_9, %c0_10, %c0_11] : memref<1x4x8x8xbf16, #tpu.memory_space<vmem>>, vector<1x4x8x8xbf16>
      %16 = vector.shape_cast %15 : vector<1x4x8x8xbf16> to vector<4x8x8xbf16>
      %17 = vector.shape_cast %14 : vector<4x8x8xbf16> to vector<1x4x8x8xbf16>
      tpu.vector_store %arg6[%c0_8, %c0_9, %c0_10, %c0_11], %17 {strides = array<i32>} : memref<1x4x8x8xbf16, #tpu.memory_space<vmem>>, vector<1x4x8x8xbf16>,
    } else {
    }
    return
  }
  func.func @transform_0(%arg0: i32, %arg1: i32, %arg2: i32) -> (i32, i32, i32, i32) {
    %c0_i32 = arith.constant 0 : i32
    %c0_i32_0 = arith.constant 0 : i32
    %c0_i32_1 = arith.constant 0 : i32
    return %arg0, %c0_i32, %arg1, %c0_i32_0 : i32, i32, i32, i32
  }
  func.func @transform_1(%arg0: i32, %arg1: i32, %arg2: i32) -> (i32, i32, i32, i32) {
    %c0_i32 = arith.constant 0 : i32
    %c0_i32_0 = arith.constant 0 : i32
    %c0_i32_1 = arith.constant 0 : i32
    return %arg0, %c0_i32, %arg2, %c0_i32_0 : i32, i32, i32, i32
  }
  func.func @transform_2(%arg0: i32, %arg1: i32, %arg2: i32) -> (i32, i32, i32, i32) {
    %c0_i32 = arith.constant 0 : i32
    %c0_i32_0 = arith.constant 0 : i32
    %c0_i32_1 = arith.constant 0 : i32
    return %arg0, %c0_i32, %arg2, %c0_i32_0 : i32, i32, i32, i32
  }
  func.func @transform_3(%arg0: i32, %arg1: i32, %arg2: i32) -> (i32, i32, i32, i32) {
    %c0_i32 = arith.constant 0 : i32
    %c0_i32_0 = arith.constant 0 : i32
    %c0_i32_1 = arith.constant 0 : i32
    return %arg0, %c0_i32, %arg1, %c0_i32_0 : i32, i32, i32, i32
  }
}

module attributes {stable_mosaic.version = 11 : i64} {
  func.func @proj_mlp_kernel(%arg0: i32, %arg1: i32, %arg2: memref<1x4x8x8xbf16, #tpu.memory_space<vmem>>, %arg3: memref<1x8x32xf32, #tpu.memory_space<vmem>>, %arg4: memref<4x8x32xbf16, #tpu.memory_space<vmem>>, %arg5: memref<1x32xf32, #tpu.memory_space<vmem>>, %arg6: memref<1x32xf32, #tpu.memory_space<vmem>>, %arg7: memref<1x32xf32, #tpu.memory_space<vmem>>, %arg8: memref<32x128xbf16, #tpu.memory_space<vmem>>, %arg9: memref<1x128xf32, #tpu.memory_space<vmem>>, %arg10: memref<128x32xbf16, #tpu.memory_space<vmem>>, %arg11: memref<1x32xf32, #tpu.memory_space<vmem>>, %arg12: memref<1x8x32xf32, #tpu.memory_space<vmem>>) attributes {dimension_semantics = [#tpu.dimension_semantics<parallel>, #tpu.dimension_semantics<parallel>], iteration_bounds = array<i64: 2, 2>, scalar_prefetch = 0 : i64, scratch_operands = 0 : i64, tpu.core_type = #tpu.core_type<tc>, window_params = [{transform_indices = @transform_0, window_bounds = array<i64: 1, 4, 8, 8>}, {transform_indices = @transform_1, window_bounds = array<i64: 1, 8, 32>}, {pipeline_mode = #tpu.pipeline_mode<synchronous>, transform_indices = @transform_2, window_bounds = array<i64: 4, 8, 32>}, {pipeline_mode = #tpu.pipeline_mode<synchronous>, transform_indices = @transform_3, window_bounds = array<i64: 1, 32>}, {pipeline_mode = #tpu.pipeline_mode<synchronous>, transform_indices = @transform_4, window_bounds = array<i64: 1, 32>}, {pipeline_mode = #tpu.pipeline_mode<synchronous>, transform_indices = @transform_5, window_bounds = array<i64: 1, 32>}, {pipeline_mode = #tpu.pipeline_mode<synchronous>, transform_indices = @transform_6, window_bounds = array<i64: 32, 128>}, {pipeline_mode = #tpu.pipeline_mode<synchronous>, transform_indices = @transform_7, window_bounds = array<i64: 1, 128>}, {pipeline_mode = #tpu.pipeline_mode<synchronous>, transform_indices = @transform_8, window_bounds = array<i64: 128, 32>}, {pipeline_mode = #tpu.pipeline_mode<synchronous>, transform_indices = @transform_9, window_bounds = array<i64: 1, 32>}, {transform_indices = @transform_10, window_bounds = array<i64: 1, 8, 32>}]} {
    %c0 = arith.constant 0 : index
    %c0_0 = arith.constant 0 : index
    %c0_1 = arith.constant 0 : index
    %0 = vector.load %arg3[%c0, %c0_0, %c0_1] : memref<1x8x32xf32, #tpu.memory_space<vmem>>, vector<1x8x32xf32>
    %1 = vector.shape_cast %0 : vector<1x8x32xf32> to vector<8x32xf32>
    %c0_2 = arith.constant 0 : index
    %c0_3 = arith.constant 0 : index
    %c0_4 = arith.constant 0 : index
    %c0_5 = arith.constant 0 : index
    %2 = vector.load %arg2[%c0_2, %c0_3, %c0_4, %c0_5] : memref<1x4x8x8xbf16, #tpu.memory_space<vmem>>, vector<1x1x8x8xbf16>
    %3 = vector.shape_cast %2 : vector<1x1x8x8xbf16> to vector<8x8xbf16>
    %c0_6 = arith.constant 0 : index
    %c0_7 = arith.constant 0 : index
    %c0_8 = arith.constant 0 : index
    %4 = vector.load %arg4[%c0_6, %c0_7, %c0_8] : memref<4x8x32xbf16, #tpu.memory_space<vmem>>, vector<1x8x32xbf16>
    %5 = vector.shape_cast %4 : vector<1x8x32xbf16> to vector<8x32xbf16>
    %cst = arith.constant dense<0.000000e+00> : vector<8x32xf32>
    %6 = tpu.matmul %3, %5, %cst {dimension_numbers = #tpu.dot_dimension_numbers<[1], [0], [0], [1], [0, 0, 1, 1], [], []>} : vector<8x8xbf16>, vector<8x32xbf16>, vector<8x32xf32> -> vector<8x32xf32>
    %c0_9 = arith.constant 0 : index
    %c1 = arith.constant 1 : index
    %c0_10 = arith.constant 0 : index
    %c0_11 = arith.constant 0 : index
    %7 = vector.load %arg2[%c0_9, %c1, %c0_10, %c0_11] : memref<1x4x8x8xbf16, #tpu.memory_space<vmem>>, vector<1x1x8x8xbf16>
    %8 = vector.shape_cast %7 : vector<1x1x8x8xbf16> to vector<8x8xbf16>
    %c1_12 = arith.constant 1 : index
    %c0_13 = arith.constant 0 : index
    %c0_14 = arith.constant 0 : index
    %9 = vector.load %arg4[%c1_12, %c0_13, %c0_14] : memref<4x8x32xbf16, #tpu.memory_space<vmem>>, vector<1x8x32xbf16>
    %10 = vector.shape_cast %9 : vector<1x8x32xbf16> to vector<8x32xbf16>
    %cst_15 = arith.constant dense<0.000000e+00> : vector<8x32xf32>
    %11 = tpu.matmul %8, %10, %cst_15 {dimension_numbers = #tpu.dot_dimension_numbers<[1], [0], [0], [1], [0, 0, 1, 1], [], []>} : vector<8x8xbf16>, vector<8x32xbf16>, vector<8x32xf32> -> vector<8x32xf32>
    %12 = arith.addf %6, %11 : vector<8x32xf32>
    %c0_16 = arith.constant 0 : index
    %c2 = arith.constant 2 : index
    %c0_17 = arith.constant 0 : index
    %c0_18 = arith.constant 0 : index
    %13 = vector.load %arg2[%c0_16, %c2, %c0_17, %c0_18] : memref<1x4x8x8xbf16, #tpu.memory_space<vmem>>, vector<1x1x8x8xbf16>
    %14 = vector.shape_cast %13 : vector<1x1x8x8xbf16> to vector<8x8xbf16>
    %c2_19 = arith.constant 2 : index
    %c0_20 = arith.constant 0 : index
    %c0_21 = arith.constant 0 : index
    %15 = vector.load %arg4[%c2_19, %c0_20, %c0_21] : memref<4x8x32xbf16, #tpu.memory_space<vmem>>, vector<1x8x32xbf16>
    %16 = vector.shape_cast %15 : vector<1x8x32xbf16> to vector<8x32xbf16>
    %cst_22 = arith.constant dense<0.000000e+00> : vector<8x32xf32>
    %17 = tpu.matmul %14, %16, %cst_22 {dimension_numbers = #tpu.dot_dimension_numbers<[1], [0], [0], [1], [0, 0, 1, 1], [], []>} : vector<8x8xbf16>, vector<8x32xbf16>, vector<8x32xf32> -> vector<8x32xf32>
    %18 = arith.addf %12, %17 : vector<8x32xf32>
    %c0_23 = arith.constant 0 : index
    %c3 = arith.constant 3 : index
    %c0_24 = arith.constant 0 : index
    %c0_25 = arith.constant 0 : index
    %19 = vector.load %arg2[%c0_23, %c3, %c0_24, %c0_25] : memref<1x4x8x8xbf16, #tpu.memory_space<vmem>>, vector<1x1x8x8xbf16>
    %20 = vector.shape_cast %19 : vector<1x1x8x8xbf16> to vector<8x8xbf16>
    %c3_26 = arith.constant 3 : index
    %c0_27 = arith.constant 0 : index
    %c0_28 = arith.constant 0 : index
    %21 = vector.load %arg4[%c3_26, %c0_27, %c0_28] : memref<4x8x32xbf16, #tpu.memory_space<vmem>>, vector<1x8x32xbf16>
    %22 = vector.shape_cast %21 : vector<1x8x32xbf16> to vector<8x32xbf16>
    %cst_29 = arith.constant dense<0.000000e+00> : vector<8x32xf32>
    %23 = tpu.matmul %20, %22, %cst_29 {dimension_numbers = #tpu.dot_dimension_numbers<[1], [0], [0], [1], [0, 0, 1, 1], [], []>} : vector<8x8xbf16>, vector<8x32xbf16>, vector<8x32xf32> -> vector<8x32xf32>
    %24 = arith.addf %18, %23 : vector<8x32xf32>
    %25 = arith.addf %1, %24 : vector<8x32xf32>
    %c0_30 = arith.constant 0 : index
    %c0_31 = arith.constant 0 : index
    %26 = vector.load %arg5[%c0_30, %c0_31] : memref<1x32xf32, #tpu.memory_space<vmem>>, vector<1x32xf32>
    %27 = vector.broadcast %26 : vector<1x32xf32> to vector<8x32xf32>
    %28 = arith.addf %25, %27 : vector<8x32xf32>
    %c0_32 = arith.constant 0 : index
    %c0_33 = arith.constant 0 : index
    %29 = vector.load %arg6[%c0_32, %c0_33] : memref<1x32xf32, #tpu.memory_space<vmem>>, vector<1x32xf32>
    %c0_34 = arith.constant 0 : index
    %c0_35 = arith.constant 0 : index
    %30 = vector.load %arg7[%c0_34, %c0_35] : memref<1x32xf32, #tpu.memory_space<vmem>>, vector<1x32xf32>
    %cst_36 = arith.constant dense<0.000000e+00> : vector<8xf32>
    %31 = vector.multi_reduction <add>, %28, %cst_36 [1] : vector<8x32xf32> to vector<8xf32>
    %32 = vector.shape_cast %31 : vector<8xf32> to vector<8x1xf32>
    %cst_37 = arith.constant 3.200000e+01 : f32
    %33 = vector.broadcast %cst_37 : f32 to vector<8x1xf32>
    %34 = arith.divf %32, %33 : vector<8x1xf32>
    %35 = vector.broadcast %34 : vector<8x1xf32> to vector<8x32xf32>
    %36 = arith.subf %28, %35 : vector<8x32xf32>
    %37 = arith.mulf %36, %36 : vector<8x32xf32>
    %cst_38 = arith.constant dense<0.000000e+00> : vector<8xf32>
    %38 = vector.multi_reduction <add>, %37, %cst_38 [1] : vector<8x32xf32> to vector<8xf32>
    %39 = vector.shape_cast %38 : vector<8xf32> to vector<8x1xf32>
    %cst_39 = arith.constant 3.200000e+01 : f32
    %40 = vector.broadcast %cst_39 : f32 to vector<8x1xf32>
    %41 = arith.divf %39, %40 : vector<8x1xf32>
    %42 = vector.broadcast %34 : vector<8x1xf32> to vector<8x32xf32>
    %43 = arith.subf %28, %42 : vector<8x32xf32>
    %cst_40 = arith.constant 9.99999974E-6 : f32
    %44 = vector.broadcast %cst_40 : f32 to vector<8x1xf32>
    %45 = arith.addf %41, %44 : vector<8x1xf32>
    %46 = math.rsqrt %45 : vector<8x1xf32>
    %47 = vector.broadcast %46 : vector<8x1xf32> to vector<8x32xf32>
    %48 = arith.mulf %43, %47 : vector<8x32xf32>
    %49 = vector.broadcast %29 : vector<1x32xf32> to vector<8x32xf32>
    %50 = arith.mulf %48, %49 : vector<8x32xf32>
    %51 = vector.broadcast %30 : vector<1x32xf32> to vector<8x32xf32>
    %52 = arith.addf %50, %51 : vector<8x32xf32>
    %53 = arith.truncf %52 : vector<8x32xf32> to vector<8x32xbf16>
    %c0_41 = arith.constant 0 : index
    %c0_42 = arith.constant 0 : index
    %54 = vector.load %arg8[%c0_41, %c0_42] : memref<32x128xbf16, #tpu.memory_space<vmem>>, vector<32x128xbf16>
    %cst_43 = arith.constant dense<0.000000e+00> : vector<8x128xf32>
    %55 = tpu.matmul %53, %54, %cst_43 {dimension_numbers = #tpu.dot_dimension_numbers<[1], [0], [0], [1], [0, 0, 1, 1], [], []>} : vector<8x32xbf16>, vector<32x128xbf16>, vector<8x128xf32> -> vector<8x128xf32>
    %c0_44 = arith.constant 0 : index
    %c0_45 = arith.constant 0 : index
    %56 = vector.load %arg9[%c0_44, %c0_45] : memref<1x128xf32, #tpu.memory_space<vmem>>, vector<1x128xf32>
    %57 = vector.broadcast %56 : vector<1x128xf32> to vector<8x128xf32>
    %58 = arith.addf %55, %57 : vector<8x128xf32>
    %cst_46 = arith.constant 5.000000e-01 : f32
    %59 = vector.broadcast %cst_46 : f32 to vector<8x128xf32>
    %60 = arith.mulf %59, %58 : vector<8x128xf32>
    %cst_47 = arith.constant 4.471500e-02 : f32
    %61 = vector.broadcast %cst_47 : f32 to vector<8x128xf32>
    %62 = arith.mulf %61, %58 : vector<8x128xf32>
    %63 = arith.mulf %62, %58 : vector<8x128xf32>
    %64 = arith.mulf %63, %58 : vector<8x128xf32>
    %65 = arith.addf %58, %64 : vector<8x128xf32>
    %cst_48 = arith.constant 0.797884583 : f32
    %66 = vector.broadcast %cst_48 : f32 to vector<8x128xf32>
    %67 = arith.mulf %66, %65 : vector<8x128xf32>
    %68 = math.tanh %67 : vector<8x128xf32>
    %cst_49 = arith.constant 1.000000e+00 : f32
    %69 = vector.broadcast %cst_49 : f32 to vector<8x128xf32>
    %70 = arith.addf %69, %68 : vector<8x128xf32>
    %71 = arith.mulf %60, %70 : vector<8x128xf32>
    %72 = arith.truncf %71 : vector<8x128xf32> to vector<8x128xbf16>
    %c0_50 = arith.constant 0 : index
    %c0_51 = arith.constant 0 : index
    %73 = vector.load %arg10[%c0_50, %c0_51] : memref<128x32xbf16, #tpu.memory_space<vmem>>, vector<128x32xbf16>
    %cst_52 = arith.constant dense<0.000000e+00> : vector<8x32xf32>
    %74 = tpu.matmul %72, %73, %cst_52 {dimension_numbers = #tpu.dot_dimension_numbers<[1], [0], [0], [1], [0, 0, 1, 1], [], []>} : vector<8x128xbf16>, vector<128x32xbf16>, vector<8x32xf32> -> vector<8x32xf32>
    %c0_53 = arith.constant 0 : index
    %c0_54 = arith.constant 0 : index
    %75 = vector.load %arg11[%c0_53, %c0_54] : memref<1x32xf32, #tpu.memory_space<vmem>>, vector<1x32xf32>
    %76 = vector.broadcast %75 : vector<1x32xf32> to vector<8x32xf32>
    %77 = arith.addf %74, %76 : vector<8x32xf32>
    %78 = arith.addf %28, %77 : vector<8x32xf32>
    %c0_55 = arith.constant 0 : index
    %c0_56 = arith.constant 0 : index
    %c0_57 = arith.constant 0 : index
    %79 = vector.load %arg12[%c0_55, %c0_56, %c0_57] : memref<1x8x32xf32, #tpu.memory_space<vmem>>, vector<1x8x32xf32>
    %80 = vector.shape_cast %79 : vector<1x8x32xf32> to vector<8x32xf32>
    %81 = vector.shape_cast %78 : vector<8x32xf32> to vector<1x8x32xf32>
    tpu.vector_store %arg12[%c0_55, %c0_56, %c0_57], %81 {strides = array<i32>} : memref<1x8x32xf32, #tpu.memory_space<vmem>>, vector<1x8x32xf32>,
    return
  }
  func.func @transform_0(%arg0: i32, %arg1: i32) -> (i32, i32, i32, i32) {
    %c0_i32 = arith.constant 0 : i32
    %c0_i32_0 = arith.constant 0 : i32
    %c0_i32_1 = arith.constant 0 : i32
    return %arg0, %c0_i32, %arg1, %c0_i32_0 : i32, i32, i32, i32
  }
  func.func @transform_1(%arg0: i32, %arg1: i32) -> (i32, i32, i32) {
    %c0_i32 = arith.constant 0 : i32
    %c0_i32_0 = arith.constant 0 : i32
    return %arg0, %arg1, %c0_i32 : i32, i32, i32
  }
  func.func @transform_2(%arg0: i32, %arg1: i32) -> (i32, i32, i32) {
    %c0_i32 = arith.constant 0 : i32
    %c0_i32_0 = arith.constant 0 : i32
    %c0_i32_1 = arith.constant 0 : i32
    %c0_i32_2 = arith.constant 0 : i32
    return %c0_i32, %c0_i32_0, %c0_i32_1 : i32, i32, i32
  }
  func.func @transform_3(%arg0: i32, %arg1: i32) -> (i32, i32) {
    %c0_i32 = arith.constant 0 : i32
    %c0_i32_0 = arith.constant 0 : i32
    %c0_i32_1 = arith.constant 0 : i32
    return %c0_i32, %c0_i32_0 : i32, i32
  }
  func.func @transform_4(%arg0: i32, %arg1: i32) -> (i32, i32) {
    %c0_i32 = arith.constant 0 : i32
    %c0_i32_0 = arith.constant 0 : i32
    %c0_i32_1 = arith.constant 0 : i32
    return %c0_i32, %c0_i32_0 : i32, i32
  }
  func.func @transform_5(%arg0: i32, %arg1: i32) -> (i32, i32) {
    %c0_i32 = arith.constant 0 : i32
    %c0_i32_0 = arith.constant 0 : i32
    %c0_i32_1 = arith.constant 0 : i32
    return %c0_i32, %c0_i32_0 : i32, i32
  }
  func.func @transform_6(%arg0: i32, %arg1: i32) -> (i32, i32) {
    %c0_i32 = arith.constant 0 : i32
    %c0_i32_0 = arith.constant 0 : i32
    %c0_i32_1 = arith.constant 0 : i32
    return %c0_i32, %c0_i32_0 : i32, i32
  }
  func.func @transform_7(%arg0: i32, %arg1: i32) -> (i32, i32) {
    %c0_i32 = arith.constant 0 : i32
    %c0_i32_0 = arith.constant 0 : i32
    %c0_i32_1 = arith.constant 0 : i32
    return %c0_i32, %c0_i32_0 : i32, i32
  }
  func.func @transform_8(%arg0: i32, %arg1: i32) -> (i32, i32) {
    %c0_i32 = arith.constant 0 : i32
    %c0_i32_0 = arith.constant 0 : i32
    %c0_i32_1 = arith.constant 0 : i32
    return %c0_i32, %c0_i32_0 : i32, i32
  }
  func.func @transform_9(%arg0: i32, %arg1: i32) -> (i32, i32) {
    %c0_i32 = arith.constant 0 : i32
    %c0_i32_0 = arith.constant 0 : i32
    %c0_i32_1 = arith.constant 0 : i32
    return %c0_i32, %c0_i32_0 : i32, i32
  }
  func.func @transform_10(%arg0: i32, %arg1: i32) -> (i32, i32, i32) {
    %c0_i32 = arith.constant 0 : i32
    %c0_i32_0 = arith.constant 0 : i32
    return %arg0, %arg1, %c0_i32 : i32, i32, i32
  }
}

</mosaic_0001>

<llo_original>
// kernel: transformer_block.3
$region0: #{transformer_block.3}
  #allocation0 [shape = 'u32[]', space=smem, size = 0x4, offset = 0x4, fixed_abs, tag = 'smem constant byte address 0x4 - core index']
  #allocation1 [shape = 'u32[72,128]{1,0:T(1,128)}', space=vmem, size = 0x9000, scoped, tag = 'internal scratch']
  %s0 = inlined_call_operand.vmem [shape: f32[2,16,32], index: 0, kind: input, shape index: {}]
  %s1 = inlined_call_operand.vmem [shape: f32[1,32], index: 1, kind: input, shape index: {}]
  %s2 = inlined_call_operand.vmem [shape: f32[1,32], index: 2, kind: input, shape index: {}]
  %s3 = inlined_call_operand.vmem [shape: bf16[32,96], index: 3, kind: input, shape index: {}]
  %s4 = inlined_call_operand.vmem [shape: f32[1,96], index: 4, kind: input, shape index: {}]
  %s5 = inlined_call_operand.vmem [shape: bf16[2,16,32], index: 5, kind: output, shape index: {0}]
  %s6 = inlined_call_operand.vmem [shape: bf16[2,16,32], index: 6, kind: output, shape index: {1}]
  %s7 = inlined_call_operand.vmem [shape: bf16[2,16,32], index: 7, kind: output, shape index: {2}]
  %8 = xla_tuple %s5, %s6, %s7
  %s9 = sld [smem:[#allocation0]]
  $region69: #{transformer_block.3} parent=0
    _
  %s11 = ssub.s32 1, %s9
  %s12 = scalar_select 0, %s11, %s9
  loop: start=0, step=1, limit=6
  $region2: #{transformer_block.3} parent=0 // loop_pre_header
    _
  $region3: #{transformer_block.3} parent=0 // loop_header
    %s14 = sphi 0, %s18
    %p15 = scmp.ge.s32.totalorder %s14, 6
    %s21 = sphi 0, %s33
    %s22 = sphi 0, %s29
    %s23 = sphi 0, %s21
    %s24 = sphi 0, %s22
    %s25 = sphi 0, %s23
    %s26 = sphi 0, %s24
    %s38 = sphi 0, %s40
    %s41 = sphi 0, %s38
    %s42 = sphi 0, %s41
    %s58 = sphi 0, %s42
    %s62 = sphi 0, %s62
    %s64 = sphi 0, %s62
    %s65 = sphi 0, %s64
    %s79 = sphi 0, %s65
    %s83 = sphi 0, %s83
    %s85 = sphi 0, %s83
    %s86 = sphi 0, %s85
    %s100 = sphi 0, %s86
    %s104 = sphi 0, %s104
    %s106 = sphi 0, %s104
    %s107 = sphi 0, %s106
    %s121 = sphi 0, %s107
    %s125 = sphi 0, %s125
    %s127 = sphi 0, %s125
    %s128 = sphi 0, %s127
    %s142 = sphi 0, %s128
    %s150 = sphi 0, %s152
    %s153 = sphi 0, %s150
    %s154 = sphi 0, %s153
    %s170 = sphi 0, %s154
    %s178 = sphi 0, %s180
    %s181 = sphi 0, %s178
    %s182 = sphi 0, %s181
    %s198 = sphi 0, %s182
    %s206 = sphi 0, %s208
    %s209 = sphi 0, %s206
    %s210 = sphi 0, %s209
    %s226 = sphi 0, %s210
  $region4: #{transformer_block.3} parent=0 // loop_header_branch
    %17 = sbr.rel (%p15) target = $region8
  $region5: #{transformer_block.3} parent=0 // loop_body
    %s19 = ssub.s32 %s14, 1
    %s20 = ssub.s32 %s14, 2
    %s27 = sadd.s32 1, %s22
    %p28 = scmp.ge.s32.totalorder %s27, 2
    %s29 = scalar_select %p28, 0, %s27
    %s30 = sadd.s32 1, %s21
    %s31 = scalar_select %p28, %s30, %s21
    %p32 = scmp.ge.s32.totalorder %s31, 2
    %s33 = scalar_select %p32, 0, %s31
    %s34 = ssub.s32 %s21, %s33
    %s35 = ssub.s32 %s22, %s29
    %s36 = sor.u32 %s34, %s35
    %p37 = scmp.eq.s32.totalorder %s36, 0
    %s39 = sadd.s32 %s38, 1
    %s40 = scalar_select %p37, %s38, %s39
    %p43 = pneg %p37
    %p44 = scmp.eq.s32.totalorder %s14, 3
    %p45 = por %p43, %p44
    %p46 = scmp.ne.s32.totalorder %s38, %s41
    %p47 = scmp.eq.s32.totalorder %s14, 0
    %p48 = por %p46, %p47
    %p49 = scmp.ne.s32.totalorder %s38, %s41
    %p50 = scmp.eq.s32.totalorder %s19, 3
    %p51 = por %p49, %p50
    %p52 = scmp.ne.s32.totalorder %s41, %s42
    %p53 = scmp.eq.s32.totalorder %s19, 0
    %p54 = por %p52, %p53
    %p55 = scmp.ne.s32.totalorder %s41, %s42
    %p56 = scmp.eq.s32.totalorder %s20, 3
    %p57 = por %p55, %p56
    %p59 = scmp.ne.s32.totalorder %s42, %s58
    %p60 = scmp.eq.s32.totalorder %s20, 0
    %p61 = por %p59, %p60
    %s63 = sadd.s32 %s62, 1
    %p66 = scmp.eq.s32.totalorder %s14, 3
    %p67 = scmp.ne.s32.totalorder %s62, %s64
    %p68 = scmp.eq.s32.totalorder %s14, 0
    %p69 = por %p67, %p68
    %p70 = scmp.ne.s32.totalorder %s62, %s64
    %p71 = scmp.eq.s32.totalorder %s19, 3
    %p72 = por %p70, %p71
    %p73 = scmp.ne.s32.totalorder %s64, %s65
    %p74 = scmp.eq.s32.totalorder %s19, 0
    %p75 = por %p73, %p74
    %p76 = scmp.ne.s32.totalorder %s64, %s65
    %p77 = scmp.eq.s32.totalorder %s20, 3
    %p78 = por %p76, %p77
    %p80 = scmp.ne.s32.totalorder %s65, %s79
    %p81 = scmp.eq.s32.totalorder %s20, 0
    %p82 = por %p80, %p81
    %s84 = sadd.s32 %s83, 1
    %p87 = scmp.eq.s32.totalorder %s14, 3
    %p88 = scmp.ne.s32.totalorder %s83, %s85
    %p89 = scmp.eq.s32.totalorder %s14, 0
    %p90 = por %p88, %p89
    %p91 = scmp.ne.s32.totalorder %s83, %s85
    %p92 = scmp.eq.s32.totalorder %s19, 3
    %p93 = por %p91, %p92
    %p94 = scmp.ne.s32.totalorder %s85, %s86
    %p95 = scmp.eq.s32.totalorder %s19, 0
    %p96 = por %p94, %p95
    %p97 = scmp.ne.s32.totalorder %s85, %s86
    %p98 = scmp.eq.s32.totalorder %s20, 3
    %p99 = por %p97, %p98
    %p101 = scmp.ne.s32.totalorder %s86, %s100
    %p102 = scmp.eq.s32.totalorder %s20, 0
    %p103 = por %p101, %p102
    %s105 = sadd.s32 %s104, 1
    %p108 = scmp.eq.s32.totalorder %s14, 3
    %p109 = scmp.ne.s32.totalorder %s104, %s106
    %p110 = scmp.eq.s32.totalorder %s14, 0
    %p111 = por %p109, %p110
    %p112 = scmp.ne.s32.totalorder %s104, %s106
    %p113 = scmp.eq.s32.totalorder %s19, 3
    %p114 = por %p112, %p113
    %p115 = scmp.ne.s32.totalorder %s106, %s107
    %p116 = scmp.eq.s32.totalorder %s19, 0
    %p117 = por %p115, %p116
    %p118 = scmp.ne.s32.totalorder %s106, %s107
    %p119 = scmp.eq.s32.totalorder %s20, 3
    %p120 = por %p118, %p119
    %p122 = scmp.ne.s32.totalorder %s107, %s121
    %p123 = scmp.eq.s32.totalorder %s20, 0
    %p124 = por %p122, %p123
    %s126 = sadd.s32 %s125, 1
    %p129 = scmp.eq.s32.totalorder %s14, 3
    %p130 = scmp.ne.s32.totalorder %s125, %s127
    %p131 = scmp.eq.s32.totalorder %s14, 0
    %p132 = por %p130, %p131
    %p133 = scmp.ne.s32.totalorder %s125, %s127
    %p134 = scmp.eq.s32.totalorder %s19, 3
    %p135 = por %p133, %p134
    %p136 = scmp.ne.s32.totalorder %s127, %s128
    %p137 = scmp.eq.s32.totalorder %s19, 0
    %p138 = por %p136, %p137
    %p139 = scmp.ne.s32.totalorder %s127, %s128
    %p140 = scmp.eq.s32.totalorder %s20, 3
    %p141 = por %p139, %p140
    %p143 = scmp.ne.s32.totalorder %s128, %s142
    %p144 = scmp.eq.s32.totalorder %s20, 0
    %p145 = por %p143, %p144
    %s146 = ssub.s32 %s21, %s33
    %s147 = ssub.s32 %s22, %s29
    %s148 = sor.u32 %s146, %s147
    %p149 = scmp.eq.s32.totalorder %s148, 0
    %s151 = sadd.s32 %s150, 1
    %s152 = scalar_select %p149, %s150, %s151
    %p155 = pneg %p149
    %p156 = scmp.eq.s32.totalorder %s14, 3
    %p157 = por %p155, %p156
    %p158 = scmp.ne.s32.totalorder %s150, %s153
    %p159 = scmp.eq.s32.totalorder %s14, 0
    %p160 = por %p158, %p159
    %p161 = scmp.ne.s32.totalorder %s150, %s153
    %p162 = scmp.eq.s32.totalorder %s19, 3
    %p163 = por %p161, %p162
    %p164 = scmp.ne.s32.totalorder %s153, %s154
    %p165 = scmp.eq.s32.totalorder %s19, 0
    %p166 = por %p164, %p165
    %p167 = scmp.ne.s32.totalorder %s153, %s154
    %p168 = scmp.eq.s32.totalorder %s20, 3
    %p169 = por %p167, %p168
    %p171 = scmp.ne.s32.totalorder %s154, %s170
    %p172 = scmp.eq.s32.totalorder %s20, 0
    %p173 = por %p171, %p172
    %s174 = ssub.s32 %s21, %s33
    %s175 = ssub.s32 %s22, %s29
    %s176 = sor.u32 %s174, %s175
    %p177 = scmp.eq.s32.totalorder %s176, 0
    %s179 = sadd.s32 %s178, 1
    %s180 = scalar_select %p177, %s178, %s179
    %p183 = pneg %p177
    %p184 = scmp.eq.s32.totalorder %s14, 3
    %p185 = por %p183, %p184
    %p186 = scmp.ne.s32.totalorder %s178, %s181
    %p187 = scmp.eq.s32.totalorder %s14, 0
    %p188 = por %p186, %p187
    %p189 = scmp.ne.s32.totalorder %s178, %s181
    %p190 = scmp.eq.s32.totalorder %s19, 3
    %p191 = por %p189, %p190
    %p192 = scmp.ne.s32.totalorder %s181, %s182
    %p193 = scmp.eq.s32.totalorder %s19, 0
    %p194 = por %p192, %p193
    %p195 = scmp.ne.s32.totalorder %s181, %s182
    %p196 = scmp.eq.s32.totalorder %s20, 3
    %p197 = por %p195, %p196
    %p199 = scmp.ne.s32.totalorder %s182, %s198
    %p200 = scmp.eq.s32.totalorder %s20, 0
    %p201 = por %p199, %p200
    %s202 = ssub.s32 %s21, %s33
    %s203 = ssub.s32 %s22, %s29
    %s204 = sor.u32 %s202, %s203
    %p205 = scmp.eq.s32.totalorder %s204, 0
    %s207 = sadd.s32 %s206, 1
    %s208 = scalar_select %p205, %s206, %s207
    %p211 = pneg %p205
    %p212 = scmp.eq.s32.totalorder %s14, 3
    %p213 = por %p211, %p212
    %p214 = scmp.ne.s32.totalorder %s206, %s209
    %p215 = scmp.eq.s32.totalorder %s14, 0
    %p216 = por %p214, %p215
    %p217 = scmp.ne.s32.totalorder %s206, %s209
    %p218 = scmp.eq.s32.totalorder %s19, 3
    %p219 = por %p217, %p218
    %p220 = scmp.ne.s32.totalorder %s209, %s210
    %p221 = scmp.eq.s32.totalorder %s19, 0
    %p222 = por %p220, %p221
    %p223 = scmp.ne.s32.totalorder %s209, %s210
    %p224 = scmp.eq.s32.totalorder %s20, 3
    %p225 = por %p223, %p224
    %p227 = scmp.ne.s32.totalorder %s210, %s226
    %p228 = scmp.eq.s32.totalorder %s20, 0
    %p229 = por %p227, %p228
    %p230 = scmp.le.s32.totalorder 1, %s14
    %p231 = scmp.lt.s32.totalorder %s14, 5
    %p232 = pnand %p230, %p231
    %p233 = pneg %p232
    // Predicated region
    $region9: #{transformer_block.3} parent=5 // pred_check
      _
    $region10: #{transformer_block.3} parent=5 // pred_check_branch
      %235 = sbr.rel (%p232) target = $region12
    $region11: #{transformer_block.3} parent=5 // pred_region
      %s236 = ssub.s32 %s14, 1
      // Predicated region
      $region13: #{transformer_block.3} parent=11 // pred_check
        %p237 = pneg %p75
      $region14: #{transformer_block.3} parent=11 // pred_check_branch
        %239 = sbr.rel (%p237) target = $region16
      $region15: #{transformer_block.3} parent=11 // pred_region
        _
      $region16: #{transformer_block.3} parent=11 // pred_fallthru
        _
      // Predicated region
      $region17: #{transformer_block.3} parent=11 // pred_check
        %p240 = pneg %p96
      $region18: #{transformer_block.3} parent=11 // pred_check_branch
        %242 = sbr.rel (%p240) target = $region20
      $region19: #{transformer_block.3} parent=11 // pred_region
        _
      $region20: #{transformer_block.3} parent=11 // pred_fallthru
        _
      // Predicated region
      $region21: #{transformer_block.3} parent=11 // pred_check
        %p243 = pneg %p117
      $region22: #{transformer_block.3} parent=11 // pred_check_branch
        %245 = sbr.rel (%p243) target = $region24
      $region23: #{transformer_block.3} parent=11 // pred_region
        _
      $region24: #{transformer_block.3} parent=11 // pred_fallthru
        _
      // Predicated region
      $region25: #{transformer_block.3} parent=11 // pred_check
        %p246 = pneg %p138
      $region26: #{transformer_block.3} parent=11 // pred_check_branch
        %248 = sbr.rel (%p246) target = $region28
      $region27: #{transformer_block.3} parent=11 // pred_region
        _
      $region28: #{transformer_block.3} parent=11 // pred_fallthru
        _
    $region12: #{transformer_block.3} parent=5 // pred_fallthru
      _
    %p249 = scmp.lt.s32.totalorder %s14, 4
    // Predicated region
    $region29: #{transformer_block.3} parent=5 // pred_check
      %p250 = pneg %p249
    $region30: #{transformer_block.3} parent=5 // pred_check_branch
      %252 = sbr.rel (%p250) target = $region32
    $region31: #{transformer_block.3} parent=5 // pred_region
      // Predicated region
      $region33: #{transformer_block.3} parent=31 // pred_check
        %p253 = pneg %p48
      $region34: #{transformer_block.3} parent=31 // pred_check_branch
        %255 = sbr.rel (%p253) target = $region36
      $region35: #{transformer_block.3} parent=31 // pred_region
        %p256 = scmp.lt.s32.totalorder %s21, 1
        %s257 = scalar_select %p256, %s21, 1
        %p258 = scmp.lt.s32.totalorder %s22, 1
        %s259 = scalar_select %p258, %s22, 1
        %s260 = smul.addr %s257, 2
        %s261 = sadd.s32 %s259, %s260
        %s262 = smul.addr %s261, 8
        %s263 = scalar_lea.vmem %s0, %s262
      $region36: #{transformer_block.3} parent=31 // pred_fallthru
        _
    $region32: #{transformer_block.3} parent=5 // pred_fallthru
      _
    %p264 = scmp.le.s32.totalorder 1, %s14
    %p265 = scmp.lt.s32.totalorder %s14, 5
    %p266 = pnand %p264, %p265
    %p267 = pneg %p266
    // Predicated region
    $region37: #{transformer_block.3} parent=5 // pred_check
      _
    $region38: #{transformer_block.3} parent=5 // pred_check_branch
      %269 = sbr.rel (%p266) target = $region40
    $region39: #{transformer_block.3} parent=5 // pred_region
      %s270 = ssub.s32 %s14, 1
      %p271 = scmp.lt.s32.totalorder %s23, 1
      %s272 = scalar_select %p271, %s23, 1
      %p273 = scmp.lt.s32.totalorder %s24, 1
      %s274 = scalar_select %p273, %s24, 1
      %s275 = smul.addr %s272, 2
      %s276 = sadd.s32 %s274, %s275
      %s277 = smul.addr %s276, 8
      %s278 = scalar_lea.vmem %s0, %s277
      %p279 = pneg %p54
      %p280 = pneg %p51
      %p281 = pneg %p75
      %p282 = pneg %p72
      %p283 = pneg %p96
      %p284 = pneg %p93
      %p285 = pneg %p117
      %p286 = pneg %p114
      %p287 = pneg %p138
      %p288 = pneg %p135
      %p289 = pneg %p166
      %p290 = pneg %p163
      %p291 = scmp.lt.s32.totalorder %s23, 1
      %s292 = scalar_select %p291, %s23, 1
      %p293 = scmp.lt.s32.totalorder %s24, 1
      %s294 = scalar_select %p293, %s24, 1
      %s295 = smul.addr %s292, 2
      %s296 = sadd.s32 %s294, %s295
      %s297 = smul.addr %s296, 4
      %s298 = scalar_lea.vmem %s5, %s297
      %p299 = pneg %p194
      %p300 = pneg %p191
      %p301 = scmp.lt.s32.totalorder %s23, 1
      %s302 = scalar_select %p301, %s23, 1
      %p303 = scmp.lt.s32.totalorder %s24, 1
      %s304 = scalar_select %p303, %s24, 1
      %s305 = smul.addr %s302, 2
      %s306 = sadd.s32 %s304, %s305
      %s307 = smul.addr %s306, 4
      %s308 = scalar_lea.vmem %s6, %s307
      %p309 = pneg %p222
      %p310 = pneg %p219
      %p311 = scmp.lt.s32.totalorder %s23, 1
      %s312 = scalar_select %p311, %s23, 1
      %p313 = scmp.lt.s32.totalorder %s24, 1
      %s314 = scalar_select %p313, %s24, 1
      %s315 = smul.addr %s312, 2
      %s316 = sadd.s32 %s314, %s315
      %s317 = smul.addr %s316, 4
      %s318 = scalar_lea.vmem %s7, %s317
      %p319 = scmp.lt.s32.totalorder %s23, 1
      %s320 = scalar_select %p319, %s23, 1
      %p321 = scmp.lt.s32.totalorder %s24, 1
      %s322 = scalar_select %p321, %s24, 1
      %s323 = smul.addr %s320, 2
      %s324 = sadd.s32 %s322, %s323
      %s325 = smul.addr %s324, 8
      %s326 = scalar_lea.vmem %s0, %s325
      %p327 = scmp.lt.s32.totalorder %s23, 1
      %s328 = scalar_select %p327, %s23, 1
      %p329 = scmp.lt.s32.totalorder %s24, 1
      %s330 = scalar_select %p329, %s24, 1
      %s331 = smul.addr %s328, 2
      %s332 = sadd.s32 %s330, %s331
      %s333 = smul.addr %s332, 4
      %s334 = scalar_lea.vmem %s5, %s333
      %p335 = scmp.lt.s32.totalorder %s23, 1
      %s336 = scalar_select %p335, %s23, 1
      %p337 = scmp.lt.s32.totalorder %s24, 1
      %s338 = scalar_select %p337, %s24, 1
      %s339 = smul.addr %s336, 2
      %s340 = sadd.s32 %s338, %s339
      %s341 = smul.addr %s340, 4
      %s342 = scalar_lea.vmem %s6, %s341
      %p343 = scmp.lt.s32.totalorder %s23, 1
      %s344 = scalar_select %p343, %s23, 1
      %p345 = scmp.lt.s32.totalorder %s24, 1
      %s346 = scalar_select %p345, %s24, 1
      %s347 = smul.addr %s344, 2
      %s348 = sadd.s32 %s346, %s347
      %s349 = smul.addr %s348, 4
      %s350 = scalar_lea.vmem %s7, %s349
      %v352 = vld [vmem:[%s326] sm:$0xff]
      %v353 = vld [vmem:[%s1] sm:$0x1]
      %v354 = vld [vmem:[%s2] sm:$0x1]
      %vm355 = vcmask 261120
      %v356 = vsel %vm355, %v352, 0.0
      %357 = vadd.xlane.f32.xlu0 %v356
      %v358 = vpop.xlane.xlu0 %357
      %v359 = vrcp.pop 32.0
      %v360 = vmul.f32 32.0, %v359
      %v361 = vsub.f32 1.0, %v360
      %v362 = vmul.f32 %v359, %v361
      %v363 = vadd.f32 %v359, %v362
      %vm364 = vweird.f32 %v359
      %v365 = vsel %vm364, %v359, %v363
      %v366 = vmul.f32 %v358, %v365
      %v367 = vsub.f32 %v352, %v366
      %v368 = vmul.f32 %v367, %v367
      %v369 = vsel %vm355, %v368, 0.0
      %370 = vadd.xlane.f32.xlu0 %v369
      %v371 = vpop.xlane.xlu0 %370
      %v372 = vmul.f32 %v371, %v365
      %v373 = vadd.f32 %v372, 1e-05
      %v374 = vrsqrt.pop %v373
      %v375 = vmul.f32 %v374, %v373
      %v376 = vmul.f32 %v375, %v374
      %v377 = vmul.f32 0.5, %v376
      %v378 = vsub.f32 1.5, %v377
      %v379 = vmul.f32 %v374, %v378
      %vm380 = vweird.f32 %v373
      %vm381 = vweird.f32 %v374
      %vm382 = vmor %vm380, %vm381
      %v383 = vsel %vm382, %v374, %v379
      %v384 = vmul.f32 %v367, %v383
      %v386 = vperm.slane %v353, 0
      %v388 = vmul.f32 %v384, %v386
      %v390 = vperm.slane %v354, 0
      %v392 = vadd.f32 %v388, %v390
      %v393 = vpack.c.bf16 %v392, %v392
      %v394 = vld [vmem:[%s3] sm:$0xf]
      %v395 = vld [vmem:[%s3 + $0x4] sm:$0xf]
      %v396 = vld [vmem:[%s3 + $0x8] sm:$0xf]
      %v397 = vld [vmem:[%s3 + $0xc] sm:$0xf]
      %v398 = vld [vmem:[%s4] sm:$0x1]
      %v400 = vperm.slane %v398, 0
      %v406 = vunpack.c.l.b16 %v394
      %v407 = vunpack.c.l.b16 %v395
      %v408 = vunpack.c.l.b16 %v396
      %v409 = vunpack.c.l.b16 %v397
      %v410 = vpack.c.b16 %v407, %v406
      %v411 = vpack.c.b16 %v409, %v408
      %v415 = vsel %vm355, %v393, 0
      %417 = vmatpush.bf16.msra.mxu0 0
      %418 = vmatpush.bf16.msra.mxu0 0
      %419 = vmatpush.bf16.msra.mxu0 0
      %420 = vmatpush.bf16.msra.mxu0 0
      %421 = vmatpush.bf16.msra.mxu0 0
      %422 = vmatpush.bf16.msra.mxu0 0
      %423 = vmatpush.bf16.msra.mxu0 %v411
      %424 = vmatpush.bf16.msra.mxu0 %v410
      %425 = vmatmul.bf16.gmra.mxu0 %v415
      %v426 = vpop.f32.mrf.mxu0
      %v427 = vadd.f32 %v400, %v426
      %v428 = vpop.f32.mrf.mxu0
      %429 = vdwg.mxu0
      %v430 = vpack.c.bf16 %v427, %v427
      %vm431 = vcmask 257024
      %432 = vst.msk [vmem:[%s334] sm:$0xf] %vm431, %v430
      %434 = vrot.lane.b32.xlu0 %v430, 96
      %v435 = vpop.permute.xlu0 %434
      %437 = vst.msk [vmem:[%s342] sm:$0xf] %vm431, %v435
      %438 = vrot.lane.b32.xlu0 %v430, 64
      %v439 = vpop.permute.xlu0 %438
      %441 = vst.msk [vmem:[%s350] sm:$0xf] %vm431, %v439
      %p442 = scmp.lt.s32.totalorder %s23, 1
      %s443 = scalar_select %p442, %s23, 1
      %p444 = scmp.lt.s32.totalorder %s24, 1
      %s445 = scalar_select %p444, %s24, 1
      %s446 = smul.addr %s443, 2
      %s447 = sadd.s32 %s445, %s446
      %s448 = smul.addr %s447, 4
      %s449 = scalar_lea.vmem %s5, %s448
      %p450 = scmp.lt.s32.totalorder %s23, 1
      %s451 = scalar_select %p450, %s23, 1
      %p452 = scmp.lt.s32.totalorder %s24, 1
      %s453 = scalar_select %p452, %s24, 1
      %s454 = smul.addr %s451, 2
      %s455 = sadd.s32 %s453, %s454
      %s456 = smul.addr %s455, 4
      %s457 = scalar_lea.vmem %s6, %s456
      %p458 = scmp.lt.s32.totalorder %s23, 1
      %s459 = scalar_select %p458, %s23, 1
      %p460 = scmp.lt.s32.totalorder %s24, 1
      %s461 = scalar_select %p460, %s24, 1
      %s462 = smul.addr %s459, 2
      %s463 = sadd.s32 %s461, %s462
      %s464 = smul.addr %s463, 4
      %s465 = scalar_lea.vmem %s7, %s464
      // Predicated region
      $region41: #{transformer_block.3} parent=39 // pred_check
        %p466 = pneg %p163
      $region42: #{transformer_block.3} parent=39 // pred_check_branch
        %468 = sbr.rel (%p466) target = $region44
      $region43: #{transformer_block.3} parent=39 // pred_region
        _
      $region44: #{transformer_block.3} parent=39 // pred_fallthru
        _
      // Predicated region
      $region45: #{transformer_block.3} parent=39 // pred_check
        %p469 = pneg %p191
      $region46: #{transformer_block.3} parent=39 // pred_check_branch
        %471 = sbr.rel (%p469) target = $region48
      $region47: #{transformer_block.3} parent=39 // pred_region
        _
      $region48: #{transformer_block.3} parent=39 // pred_fallthru
        _
      // Predicated region
      $region49: #{transformer_block.3} parent=39 // pred_check
        %p472 = pneg %p219
      $region50: #{transformer_block.3} parent=39 // pred_check_branch
        %474 = sbr.rel (%p472) target = $region52
      $region51: #{transformer_block.3} parent=39 // pred_region
        _
      $region52: #{transformer_block.3} parent=39 // pred_fallthru
        _
    $region40: #{transformer_block.3} parent=5 // pred_fallthru
      _
    %p475 = scmp.le.s32.totalorder 2, %s14
    // Predicated region
    $region53: #{transformer_block.3} parent=5 // pred_check
      %p476 = pneg %p475
    $region54: #{transformer_block.3} parent=5 // pred_check_branch
      %478 = sbr.rel (%p476) target = $region56
    $region55: #{transformer_block.3} parent=5 // pred_region
      %s479 = ssub.s32 %s14, 2
      // Predicated region
      $region57: #{transformer_block.3} parent=55 // pred_check
        %p480 = pneg %p169
      $region58: #{transformer_block.3} parent=55 // pred_check_branch
        %482 = sbr.rel (%p480) target = $region60
      $region59: #{transformer_block.3} parent=55 // pred_region
        %p483 = scmp.lt.s32.totalorder %s25, 1
        %s484 = scalar_select %p483, %s25, 1
        %p485 = scmp.lt.s32.totalorder %s26, 1
        %s486 = scalar_select %p485, %s26, 1
        %s487 = smul.addr %s484, 2
        %s488 = sadd.s32 %s486, %s487
        %s489 = smul.addr %s488, 4
        %s490 = scalar_lea.vmem %s5, %s489
      $region60: #{transformer_block.3} parent=55 // pred_fallthru
        _
      // Predicated region
      $region61: #{transformer_block.3} parent=55 // pred_check
        %p491 = pneg %p197
      $region62: #{transformer_block.3} parent=55 // pred_check_branch
        %493 = sbr.rel (%p491) target = $region64
      $region63: #{transformer_block.3} parent=55 // pred_region
        %p494 = scmp.lt.s32.totalorder %s25, 1
        %s495 = scalar_select %p494, %s25, 1
        %p496 = scmp.lt.s32.totalorder %s26, 1
        %s497 = scalar_select %p496, %s26, 1
        %s498 = smul.addr %s495, 2
        %s499 = sadd.s32 %s497, %s498
        %s500 = smul.addr %s499, 4
        %s501 = scalar_lea.vmem %s6, %s500
      $region64: #{transformer_block.3} parent=55 // pred_fallthru
        _
      // Predicated region
      $region65: #{transformer_block.3} parent=55 // pred_check
        %p502 = pneg %p225
      $region66: #{transformer_block.3} parent=55 // pred_check_branch
        %504 = sbr.rel (%p502) target = $region68
      $region67: #{transformer_block.3} parent=55 // pred_region
        %p505 = scmp.lt.s32.totalorder %s25, 1
        %s506 = scalar_select %p505, %s25, 1
        %p507 = scmp.lt.s32.totalorder %s26, 1
        %s508 = scalar_select %p507, %s26, 1
        %s509 = smul.addr %s506, 2
        %s510 = sadd.s32 %s508, %s509
        %s511 = smul.addr %s510, 4
        %s512 = scalar_lea.vmem %s7, %s511
      $region68: #{transformer_block.3} parent=55 // pred_fallthru
        _
    $region56: #{transformer_block.3} parent=5 // pred_fallthru
      _
  $region6: #{transformer_block.3} parent=0 // loop_footer
    %s18 = sadd.s32 1, %s14
  $region7: #{transformer_block.3} parent=0 // loop_footer_branch
    %13 = sbr.rel target = $region3
  $region8: #{transformer_block.3} parent=0 // loop_exit
    _

// kernel: transformer_block.5
$region0: #{transformer_block.5}
  #allocation0 [shape = 'u32[]', space=smem, size = 0x4, offset = 0x4, fixed_abs, tag = 'smem constant byte address 0x4 - core index']
  #allocation1 [shape = 'u32[72,128]{1,0:T(1,128)}', space=vmem, size = 0x9000, scoped, tag = 'internal scratch']
  %s0 = inlined_call_operand.vmem [shape: bf16[2,4,16,8], index: 0, kind: input, shape index: {}]
  %s1 = inlined_call_operand.vmem [shape: f32[2,16,32], index: 1, kind: input, shape index: {}]
  %s2 = inlined_call_operand.vmem [shape: bf16[4,8,32], index: 2, kind: input, shape index: {}]
  %s3 = inlined_call_operand.vmem [shape: f32[1,32], index: 3, kind: input, shape index: {}]
  %s4 = inlined_call_operand.vmem [shape: f32[1,32], index: 4, kind: input, shape index: {}]
  %s5 = inlined_call_operand.vmem [shape: f32[1,32], index: 5, kind: input, shape index: {}]
  %s6 = inlined_call_operand.vmem [shape: bf16[32,128], index: 6, kind: input, shape index: {}]
  %s7 = inlined_call_operand.vmem [shape: f32[1,128], index: 7, kind: input, shape index: {}]
  %s8 = inlined_call_operand.vmem [shape: bf16[128,32], index: 8, kind: input, shape index: {}]
  %s9 = inlined_call_operand.vmem [shape: f32[1,32], index: 9, kind: input, shape index: {}]
  %s10 = inlined_call_operand.hbm [shape: f32[2,16,32], index: 10, kind: output, shape index: {}]
  %s11 = sld [smem:[#allocation0]]
  $region114: #{transformer_block.5} parent=0
    _
  %s13 = ssub.s32 1, %s11
  %s14 = scalar_select 0, %s13, %s11
  $region1: #{transformer_block.5} parent=0
    #allocation2 [shape = 'u8[16384]{0}', space=vmem, size = 0x4000, scoped, tag = 'input window, operand 0']
    #allocation3 [shape = 'u8[8192]{0}', space=vmem, size = 0x2000, scoped, tag = 'output window, operand 0']
    #allocation4 [shape = 's32[2]{0}', space=sflag, size = 0x8, scoped, tag = 'scoped memory for transformer_block.5']
    %15 = vsyncpa [#allocation4], 0
    %s16 = scalar_lea.sflag [#allocation4], 1
    %17 = vsyncpa %s16, 0
    loop: start=0, step=1, limit=6
    $region2: #{transformer_block.5} parent=1 // loop_pre_header
      _
    $region3: #{transformer_block.5} parent=1 // loop_header
      %s19 = sphi 0, %s23
      %p20 = scmp.ge.s32.totalorder %s19, 6
      %s26 = sphi 0, %s38
      %s27 = sphi 0, %s34
      %s28 = sphi 0, %s26
      %s29 = sphi 0, %s27
      %s30 = sphi 0, %s28
      %s31 = sphi 0, %s29
      %s43 = sphi 0, %s45
      %s46 = sphi 0, %s43
      %s47 = sphi 0, %s46
      %s63 = sphi 0, %s47
      %s71 = sphi 0, %s73
      %s74 = sphi 0, %s71
      %s75 = sphi 0, %s74
      %s91 = sphi 0, %s75
      %s95 = sphi 0, %s95
      %s97 = sphi 0, %s95
      %s98 = sphi 0, %s97
      %s112 = sphi 0, %s98
      %s116 = sphi 0, %s116
      %s118 = sphi 0, %s116
      %s119 = sphi 0, %s118
      %s133 = sphi 0, %s119
      %s137 = sphi 0, %s137
      %s139 = sphi 0, %s137
      %s140 = sphi 0, %s139
      %s154 = sphi 0, %s140
      %s158 = sphi 0, %s158
      %s160 = sphi 0, %s158
      %s161 = sphi 0, %s160
      %s175 = sphi 0, %s161
      %s179 = sphi 0, %s179
      %s181 = sphi 0, %s179
      %s182 = sphi 0, %s181
      %s196 = sphi 0, %s182
      %s200 = sphi 0, %s200
      %s202 = sphi 0, %s200
      %s203 = sphi 0, %s202
      %s217 = sphi 0, %s203
      %s221 = sphi 0, %s221
      %s223 = sphi 0, %s221
      %s224 = sphi 0, %s223
      %s238 = sphi 0, %s224
      %s242 = sphi 0, %s242
      %s244 = sphi 0, %s242
      %s245 = sphi 0, %s244
      %s259 = sphi 0, %s245
      %s267 = sphi 0, %s269
      %s270 = sphi 0, %s267
      %s271 = sphi 0, %s270
      %s287 = sphi 0, %s271
    $region4: #{transformer_block.5} parent=1 // loop_header_branch
      %22 = sbr.rel (%p20) target = $region8
    $region5: #{transformer_block.5} parent=1 // loop_body
      %s24 = ssub.s32 %s19, 1
      %s25 = ssub.s32 %s19, 2
      %s32 = sadd.s32 1, %s27
      %p33 = scmp.ge.s32.totalorder %s32, 2
      %s34 = scalar_select %p33, 0, %s32
      %s35 = sadd.s32 1, %s26
      %s36 = scalar_select %p33, %s35, %s26
      %p37 = scmp.ge.s32.totalorder %s36, 2
      %s38 = scalar_select %p37, 0, %s36
      %s39 = ssub.s32 %s26, %s38
      %s40 = ssub.s32 %s27, %s34
      %s41 = sor.u32 %s39, %s40
      %p42 = scmp.eq.s32.totalorder %s41, 0
      %s44 = sadd.s32 %s43, 1
      %s45 = scalar_select %p42, %s43, %s44
      %p48 = pneg %p42
      %p49 = scmp.eq.s32.totalorder %s19, 3
      %p50 = por %p48, %p49
      %p51 = scmp.ne.s32.totalorder %s43, %s46
      %p52 = scmp.eq.s32.totalorder %s19, 0
      %p53 = por %p51, %p52
      %p54 = scmp.ne.s32.totalorder %s43, %s46
      %p55 = scmp.eq.s32.totalorder %s24, 3
      %p56 = por %p54, %p55
      %p57 = scmp.ne.s32.totalorder %s46, %s47
      %p58 = scmp.eq.s32.totalorder %s24, 0
      %p59 = por %p57, %p58
      %p60 = scmp.ne.s32.totalorder %s46, %s47
      %p61 = scmp.eq.s32.totalorder %s25, 3
      %p62 = por %p60, %p61
      %p64 = scmp.ne.s32.totalorder %s47, %s63
      %p65 = scmp.eq.s32.totalorder %s25, 0
      %p66 = por %p64, %p65
      %s67 = ssub.s32 %s26, %s38
      %s68 = ssub.s32 %s27, %s34
      %s69 = sor.u32 %s67, %s68
      %p70 = scmp.eq.s32.totalorder %s69, 0
      %s72 = sadd.s32 %s71, 1
      %s73 = scalar_select %p70, %s71, %s72
      %p76 = pneg %p70
      %p77 = scmp.eq.s32.totalorder %s19, 3
      %p78 = por %p76, %p77
      %p79 = scmp.ne.s32.totalorder %s71, %s74
      %p80 = scmp.eq.s32.totalorder %s19, 0
      %p81 = por %p79, %p80
      %p82 = scmp.ne.s32.totalorder %s71, %s74
      %p83 = scmp.eq.s32.totalorder %s24, 3
      %p84 = por %p82, %p83
      %p85 = scmp.ne.s32.totalorder %s74, %s75
      %p86 = scmp.eq.s32.totalorder %s24, 0
      %p87 = por %p85, %p86
      %p88 = scmp.ne.s32.totalorder %s74, %s75
      %p89 = scmp.eq.s32.totalorder %s25, 3
      %p90 = por %p88, %p89
      %p92 = scmp.ne.s32.totalorder %s75, %s91
      %p93 = scmp.eq.s32.totalorder %s25, 0
      %p94 = por %p92, %p93
      %s96 = sadd.s32 %s95, 1
      %p99 = scmp.eq.s32.totalorder %s19, 3
      %p100 = scmp.ne.s32.totalorder %s95, %s97
      %p101 = scmp.eq.s32.totalorder %s19, 0
      %p102 = por %p100, %p101
      %p103 = scmp.ne.s32.totalorder %s95, %s97
      %p104 = scmp.eq.s32.totalorder %s24, 3
      %p105 = por %p103, %p104
      %p106 = scmp.ne.s32.totalorder %s97, %s98
      %p107 = scmp.eq.s32.totalorder %s24, 0
      %p108 = por %p106, %p107
      %p109 = scmp.ne.s32.totalorder %s97, %s98
      %p110 = scmp.eq.s32.totalorder %s25, 3
      %p111 = por %p109, %p110
      %p113 = scmp.ne.s32.totalorder %s98, %s112
      %p114 = scmp.eq.s32.totalorder %s25, 0
      %p115 = por %p113, %p114
      %s117 = sadd.s32 %s116, 1
      %p120 = scmp.eq.s32.totalorder %s19, 3
      %p121 = scmp.ne.s32.totalorder %s116, %s118
      %p122 = scmp.eq.s32.totalorder %s19, 0
      %p123 = por %p121, %p122
      %p124 = scmp.ne.s32.totalorder %s116, %s118
      %p125 = scmp.eq.s32.totalorder %s24, 3
      %p126 = por %p124, %p125
      %p127 = scmp.ne.s32.totalorder %s118, %s119
      %p128 = scmp.eq.s32.totalorder %s24, 0
      %p129 = por %p127, %p128
      %p130 = scmp.ne.s32.totalorder %s118, %s119
      %p131 = scmp.eq.s32.totalorder %s25, 3
      %p132 = por %p130, %p131
      %p134 = scmp.ne.s32.totalorder %s119, %s133
      %p135 = scmp.eq.s32.totalorder %s25, 0
      %p136 = por %p134, %p135
      %s138 = sadd.s32 %s137, 1
      %p141 = scmp.eq.s32.totalorder %s19, 3
      %p142 = scmp.ne.s32.totalorder %s137, %s139
      %p143 = scmp.eq.s32.totalorder %s19, 0
      %p144 = por %p142, %p143
      %p145 = scmp.ne.s32.totalorder %s137, %s139
      %p146 = scmp.eq.s32.totalorder %s24, 3
      %p147 = por %p145, %p146
      %p148 = scmp.ne.s32.totalorder %s139, %s140
      %p149 = scmp.eq.s32.totalorder %s24, 0
      %p150 = por %p148, %p149
      %p151 = scmp.ne.s32.totalorder %s139, %s140
      %p152 = scmp.eq.s32.totalorder %s25, 3
      %p153 = por %p151, %p152
      %p155 = scmp.ne.s32.totalorder %s140, %s154
      %p156 = scmp.eq.s32.totalorder %s25, 0
      %p157 = por %p155, %p156
      %s159 = sadd.s32 %s158, 1
      %p162 = scmp.eq.s32.totalorder %s19, 3
      %p163 = scmp.ne.s32.totalorder %s158, %s160
      %p164 = scmp.eq.s32.totalorder %s19, 0
      %p165 = por %p163, %p164
      %p166 = scmp.ne.s32.totalorder %s158, %s160
      %p167 = scmp.eq.s32.totalorder %s24, 3
      %p168 = por %p166, %p167
      %p169 = scmp.ne.s32.totalorder %s160, %s161
      %p170 = scmp.eq.s32.totalorder %s24, 0
      %p171 = por %p169, %p170
      %p172 = scmp.ne.s32.totalorder %s160, %s161
      %p173 = scmp.eq.s32.totalorder %s25, 3
      %p174 = por %p172, %p173
      %p176 = scmp.ne.s32.totalorder %s161, %s175
      %p177 = scmp.eq.s32.totalorder %s25, 0
      %p178 = por %p176, %p177
      %s180 = sadd.s32 %s179, 1
      %p183 = scmp.eq.s32.totalorder %s19, 3
      %p184 = scmp.ne.s32.totalorder %s179, %s181
      %p185 = scmp.eq.s32.totalorder %s19, 0
      %p186 = por %p184, %p185
      %p187 = scmp.ne.s32.totalorder %s179, %s181
      %p188 = scmp.eq.s32.totalorder %s24, 3
      %p189 = por %p187, %p188
      %p190 = scmp.ne.s32.totalorder %s181, %s182
      %p191 = scmp.eq.s32.totalorder %s24, 0
      %p192 = por %p190, %p191
      %p193 = scmp.ne.s32.totalorder %s181, %s182
      %p194 = scmp.eq.s32.totalorder %s25, 3
      %p195 = por %p193, %p194
      %p197 = scmp.ne.s32.totalorder %s182, %s196
      %p198 = scmp.eq.s32.totalorder %s25, 0
      %p199 = por %p197, %p198
      %s201 = sadd.s32 %s200, 1
      %p204 = scmp.eq.s32.totalorder %s19, 3
      %p205 = scmp.ne.s32.totalorder %s200, %s202
      %p206 = scmp.eq.s32.totalorder %s19, 0
      %p207 = por %p205, %p206
      %p208 = scmp.ne.s32.totalorder %s200, %s202
      %p209 = scmp.eq.s32.totalorder %s24, 3
      %p210 = por %p208, %p209
      %p211 = scmp.ne.s32.totalorder %s202, %s203
      %p212 = scmp.eq.s32.totalorder %s24, 0
      %p213 = por %p211, %p212
      %p214 = scmp.ne.s32.totalorder %s202, %s203
      %p215 = scmp.eq.s32.totalorder %s25, 3
      %p216 = por %p214, %p215
      %p218 = scmp.ne.s32.totalorder %s203, %s217
      %p219 = scmp.eq.s32.totalorder %s25, 0
      %p220 = por %p218, %p219
      %s222 = sadd.s32 %s221, 1
      %p225 = scmp.eq.s32.totalorder %s19, 3
      %p226 = scmp.ne.s32.totalorder %s221, %s223
      %p227 = scmp.eq.s32.totalorder %s19, 0
      %p228 = por %p226, %p227
      %p229 = scmp.ne.s32.totalorder %s221, %s223
      %p230 = scmp.eq.s32.totalorder %s24, 3
      %p231 = por %p229, %p230
      %p232 = scmp.ne.s32.totalorder %s223, %s224
      %p233 = scmp.eq.s32.totalorder %s24, 0
      %p234 = por %p232, %p233
      %p235 = scmp.ne.s32.totalorder %s223, %s224
      %p236 = scmp.eq.s32.totalorder %s25, 3
      %p237 = por %p235, %p236
      %p239 = scmp.ne.s32.totalorder %s224, %s238
      %p240 = scmp.eq.s32.totalorder %s25, 0
      %p241 = por %p239, %p240
      %s243 = sadd.s32 %s242, 1
      %p246 = scmp.eq.s32.totalorder %s19, 3
      %p247 = scmp.ne.s32.totalorder %s242, %s244
      %p248 = scmp.eq.s32.totalorder %s19, 0
      %p249 = por %p247, %p248
      %p250 = scmp.ne.s32.totalorder %s242, %s244
      %p251 = scmp.eq.s32.totalorder %s24, 3
      %p252 = por %p250, %p251
      %p253 = scmp.ne.s32.totalorder %s244, %s245
      %p254 = scmp.eq.s32.totalorder %s24, 0
      %p255 = por %p253, %p254
      %p256 = scmp.ne.s32.totalorder %s244, %s245
      %p257 = scmp.eq.s32.totalorder %s25, 3
      %p258 = por %p256, %p257
      %p260 = scmp.ne.s32.totalorder %s245, %s259
      %p261 = scmp.eq.s32.totalorder %s25, 0
      %p262 = por %p260, %p261
      %s263 = ssub.s32 %s26, %s38
      %s264 = ssub.s32 %s27, %s34
      %s265 = sor.u32 %s263, %s264
      %p266 = scmp.eq.s32.totalorder %s265, 0
      %s268 = sadd.s32 %s267, 1
      %s269 = scalar_select %p266, %s267, %s268
      %p272 = pneg %p266
      %p273 = scmp.eq.s32.totalorder %s19, 3
      %p274 = por %p272, %p273
      %p275 = scmp.ne.s32.totalorder %s267, %s270
      %p276 = scmp.eq.s32.totalorder %s19, 0
      %p277 = por %p275, %p276
      %p278 = scmp.ne.s32.totalorder %s267, %s270
      %p279 = scmp.eq.s32.totalorder %s24, 3
      %p280 = por %p278, %p279
      %p281 = scmp.ne.s32.totalorder %s270, %s271
      %p282 = scmp.eq.s32.totalorder %s24, 0
      %p283 = por %p281, %p282
      %p284 = scmp.ne.s32.totalorder %s270, %s271
      %p285 = scmp.eq.s32.totalorder %s25, 3
      %p286 = por %p284, %p285
      %p288 = scmp.ne.s32.totalorder %s271, %s287
      %p289 = scmp.eq.s32.totalorder %s25, 0
      %p290 = por %p288, %p289
      %p291 = scmp.le.s32.totalorder 1, %s19
      %p292 = scmp.lt.s32.totalorder %s19, 5
      %p293 = pnand %p291, %p292
      %p294 = pneg %p293
      // Predicated region
      $region9: #{transformer_block.5} parent=5 // pred_check
        _
      $region10: #{transformer_block.5} parent=5 // pred_check_branch
        %296 = sbr.rel (%p293) target = $region12
      $region11: #{transformer_block.5} parent=5 // pred_region
        %s297 = ssub.s32 %s19, 1
        // Predicated region
        $region13: #{transformer_block.5} parent=11 // pred_check
          %p298 = pneg %p108
        $region14: #{transformer_block.5} parent=11 // pred_check_branch
          %300 = sbr.rel (%p298) target = $region16
        $region15: #{transformer_block.5} parent=11 // pred_region
          _
        $region16: #{transformer_block.5} parent=11 // pred_fallthru
          _
        // Predicated region
        $region17: #{transformer_block.5} parent=11 // pred_check
          %p301 = pneg %p129
        $region18: #{transformer_block.5} parent=11 // pred_check_branch
          %303 = sbr.rel (%p301) target = $region20
        $region19: #{transformer_block.5} parent=11 // pred_region
          _
        $region20: #{transformer_block.5} parent=11 // pred_fallthru
          _
        // Predicated region
        $region21: #{transformer_block.5} parent=11 // pred_check
          %p304 = pneg %p150
        $region22: #{transformer_block.5} parent=11 // pred_check_branch
          %306 = sbr.rel (%p304) target = $region24
        $region23: #{transformer_block.5} parent=11 // pred_region
          _
        $region24: #{transformer_block.5} parent=11 // pred_fallthru
          _
        // Predicated region
        $region25: #{transformer_block.5} parent=11 // pred_check
          %p307 = pneg %p171
        $region26: #{transformer_block.5} parent=11 // pred_check_branch
          %309 = sbr.rel (%p307) target = $region28
        $region27: #{transformer_block.5} parent=11 // pred_region
          _
        $region28: #{transformer_block.5} parent=11 // pred_fallthru
          _
        // Predicated region
        $region29: #{transformer_block.5} parent=11 // pred_check
          %p310 = pneg %p192
        $region30: #{transformer_block.5} parent=11 // pred_check_branch
          %312 = sbr.rel (%p310) target = $region32
        $region31: #{transformer_block.5} parent=11 // pred_region
          _
        $region32: #{transformer_block.5} parent=11 // pred_fallthru
          _
        // Predicated region
        $region33: #{transformer_block.5} parent=11 // pred_check
          %p313 = pneg %p213
        $region34: #{transformer_block.5} parent=11 // pred_check_branch
          %315 = sbr.rel (%p313) target = $region36
        $region35: #{transformer_block.5} parent=11 // pred_region
          _
        $region36: #{transformer_block.5} parent=11 // pred_fallthru
          _
        // Predicated region
        $region37: #{transformer_block.5} parent=11 // pred_check
          %p316 = pneg %p234
        $region38: #{transformer_block.5} parent=11 // pred_check_branch
          %318 = sbr.rel (%p316) target = $region40
        $region39: #{transformer_block.5} parent=11 // pred_region
          _
        $region40: #{transformer_block.5} parent=11 // pred_fallthru
          _
        // Predicated region
        $region41: #{transformer_block.5} parent=11 // pred_check
          %p319 = pneg %p255
        $region42: #{transformer_block.5} parent=11 // pred_check_branch
          %321 = sbr.rel (%p319) target = $region44
        $region43: #{transformer_block.5} parent=11 // pred_region
          _
        $region44: #{transformer_block.5} parent=11 // pred_fallthru
          _
      $region12: #{transformer_block.5} parent=5 // pred_fallthru
        _
      %p322 = scmp.lt.s32.totalorder %s19, 4
      // Predicated region
      $region45: #{transformer_block.5} parent=5 // pred_check
        %p323 = pneg %p322
      $region46: #{transformer_block.5} parent=5 // pred_check_branch
        %325 = sbr.rel (%p323) target = $region48
      $region47: #{transformer_block.5} parent=5 // pred_region
        // Predicated region
        $region49: #{transformer_block.5} parent=47 // pred_check
          %p326 = pneg %p53
        $region50: #{transformer_block.5} parent=47 // pred_check_branch
          %328 = sbr.rel (%p326) target = $region52
        $region51: #{transformer_block.5} parent=47 // pred_region
          %s329 = sand.u32 %s43, 1
          %s330 = sand.u32 %s43, 1
          %s331 = smul.addr %s330, 16
          %s332 = scalar_lea.vmem [#allocation2], %s331
          %s333 = smul.addr %s26, 8
          %s334 = sadd.s32 %s27, %s333
          %s335 = smul.addr %s334, 4
          %s336 = scalar_lea.vmem %s0, %s335
          // Predicated region
          $region53: #{transformer_block.5} parent=51 // pred_check
            _
          $region54: #{transformer_block.5} parent=51 // pred_check_branch
            %338 = sbr.rel (0) target = $region56
          $region55: #{transformer_block.5} parent=51 // pred_region
            // Predicated region
            $region57: #{transformer_block.5} parent=55 // pred_check
              _
            $region58: #{transformer_block.5} parent=55 // pred_check_branch
              %340 = sbr.rel target = $region60
            $region59: #{transformer_block.5} parent=55 // pred_region
              // Predicated region
              $region72: #{transformer_block.5} parent=59 // pred_check
                _
              $region73: #{transformer_block.5} parent=59 // pred_check_branch
                %362 = sbr.rel (0) target = $region75
              $region74: #{transformer_block.5} parent=59 // pred_region
                loop: start=0, step=1, limit=1
                $region76: #{transformer_block.5} parent=74 // loop_pre_header
                  _
                $region77: #{transformer_block.5} parent=74 // loop_header
                  %s364 = sphi 0, %s368
                  %p365 = scmp.ge.s32.totalorder %s364, 1
                  %s369 = sphi %s336, %s336
                  %s370 = sphi %s332, %s332
                $region78: #{transformer_block.5} parent=74 // loop_header_branch
                  %367 = sbr.rel (%p365) target = $region82
                $region79: #{transformer_block.5} parent=74 // loop_body
                  _
                $region80: #{transformer_block.5} parent=74 // loop_footer
                  %s368 = sadd.s32 1, %s364
                $region81: #{transformer_block.5} parent=74 // loop_footer_branch
                  %363 = sbr.rel target = $region77
                $region82: #{transformer_block.5} parent=74 // loop_exit
                  _
                %s372 = ssub.s32 16, 1
                loop: start=0, step=1, limit=1
                $region83: #{transformer_block.5} parent=74 // loop_pre_header
                  _
                $region84: #{transformer_block.5} parent=74 // loop_header
                  %s374 = sphi 0, %s378
                  %p375 = scmp.ge.s32.totalorder %s374, 1
                  %s379 = sphi %s336, %s336
                  %s380 = sphi %s332, %s332
                $region85: #{transformer_block.5} parent=74 // loop_header_branch
                  %377 = sbr.rel (%p375) target = $region89
                $region86: #{transformer_block.5} parent=74 // loop_body
                  %v381 = vld [vmem:[%s379] sm:%s372]
                  %382 = vst [vmem:[%s380] sm:%s372] %v381
                  %v383 = vld [vmem:[%s379 + $0x8] sm:%s372]
                  %384 = vst [vmem:[%s380 + $0x4] sm:%s372] %v383
                  %v385 = vld [vmem:[%s379 + $0x10] sm:%s372]
                  %386 = vst [vmem:[%s380 + $0x8] sm:%s372] %v385
                  %v387 = vld [vmem:[%s379 + $0x18] sm:%s372]
                  %388 = vst [vmem:[%s380 + $0xc] sm:%s372] %v387
                $region87: #{transformer_block.5} parent=74 // loop_footer
                  %s378 = sadd.s32 1, %s374
                $region88: #{transformer_block.5} parent=74 // loop_footer_branch
                  %373 = sbr.rel target = $region84
                $region89: #{transformer_block.5} parent=74 // loop_exit
                  _
              $region75: #{transformer_block.5} parent=59 // pred_fallthru
                _
            $region60: #{transformer_block.5} parent=55 // pred_fallthru
              _
            // Predicated region
            $region61: #{transformer_block.5} parent=55 // pred_check
              _
            $region62: #{transformer_block.5} parent=55 // pred_check_branch
              %342 = sbr.rel (0) target = $region64
            $region63: #{transformer_block.5} parent=55 // pred_region
              %s344 = ssub.s32 16, 1
              loop: start=0, step=1, limit=1
              $region65: #{transformer_block.5} parent=63 // loop_pre_header
                _
              $region66: #{transformer_block.5} parent=63 // loop_header
                %s346 = sphi 0, %s350
                %p347 = scmp.ge.s32.totalorder %s346, 1
                %s351 = sphi %s336, %s336
                %s352 = sphi %s332, %s332
              $region67: #{transformer_block.5} parent=63 // loop_header_branch
                %349 = sbr.rel (%p347) target = $region71
              $region68: #{transformer_block.5} parent=63 // loop_body
                %v353 = vld [vmem:[%s351] sm:%s344]
                %354 = vst [vmem:[%s352] sm:%s344] %v353
                %v355 = vld [vmem:[%s351 + $0x8] sm:%s344]
                %356 = vst [vmem:[%s352 + $0x4] sm:%s344] %v355
                %v357 = vld [vmem:[%s351 + $0x10] sm:%s344]
                %358 = vst [vmem:[%s352 + $0x8] sm:%s344] %v357
                %v359 = vld [vmem:[%s351 + $0x18] sm:%s344]
                %360 = vst [vmem:[%s352 + $0xc] sm:%s344] %v359
              $region69: #{transformer_block.5} parent=63 // loop_footer
                %s350 = sadd.s32 1, %s346
              $region70: #{transformer_block.5} parent=63 // loop_footer_branch
                %345 = sbr.rel target = $region66
              $region71: #{transformer_block.5} parent=63 // loop_exit
                _
            $region64: #{transformer_block.5} parent=55 // pred_fallthru
              _
          $region56: #{transformer_block.5} parent=51 // pred_fallthru
            _
          %389 = vnop
        $region52: #{transformer_block.5} parent=47 // pred_fallthru
          _
        // Predicated region
        $region90: #{transformer_block.5} parent=47 // pred_check
          %p390 = pneg %p81
        $region91: #{transformer_block.5} parent=47 // pred_check_branch
          %392 = sbr.rel (%p390) target = $region93
        $region92: #{transformer_block.5} parent=47 // pred_region
          %p393 = scmp.lt.s32.totalorder %s26, 1
          %s394 = scalar_select %p393, %s26, 1
          %p395 = scmp.lt.s32.totalorder %s27, 1
          %s396 = scalar_select %p395, %s27, 1
          %s397 = smul.addr %s394, 2
          %s398 = sadd.s32 %s396, %s397
          %s399 = smul.addr %s398, 8
          %s400 = scalar_lea.vmem %s1, %s399
        $region93: #{transformer_block.5} parent=47 // pred_fallthru
          _
      $region48: #{transformer_block.5} parent=5 // pred_fallthru
        _
      %p401 = scmp.le.s32.totalorder 1, %s19
      %p402 = scmp.lt.s32.totalorder %s19, 5
      %p403 = pnand %p401, %p402
      %p404 = pneg %p403
      // Predicated region
      $region94: #{transformer_block.5} parent=5 // pred_check
        _
      $region95: #{transformer_block.5} parent=5 // pred_check_branch
        %406 = sbr.rel (%p403) target = $region97
      $region96: #{transformer_block.5} parent=5 // pred_region
        %s407 = ssub.s32 %s19, 1
        %s408 = sand.u32 %s46, 1
        %s409 = sand.u32 %s46, 1
        %s410 = smul.addr %s409, 16
        %s411 = scalar_lea.vmem [#allocation2], %s410
        // Predicated region
        $region98: #{transformer_block.5} parent=96 // pred_check
          %p412 = pneg %p59
        $region99: #{transformer_block.5} parent=96 // pred_check_branch
          %414 = sbr.rel (%p412) target = $region101
        $region100: #{transformer_block.5} parent=96 // pred_region
          _
        $region101: #{transformer_block.5} parent=96 // pred_fallthru
          _
        %s415 = sand.u32 %s46, 1
        %s416 = sand.u32 %s46, 1
        %s417 = smul.addr %s416, 16
        %s418 = scalar_lea.vmem [#allocation2], %s417
        %p419 = pneg %p59
        %p420 = pneg %p56
        %p421 = scmp.lt.s32.totalorder %s28, 1
        %s422 = scalar_select %p421, %s28, 1
        %p423 = scmp.lt.s32.totalorder %s29, 1
        %s424 = scalar_select %p423, %s29, 1
        %s425 = smul.addr %s422, 2
        %s426 = sadd.s32 %s424, %s425
        %s427 = smul.addr %s426, 8
        %s428 = scalar_lea.vmem %s1, %s427
        %p429 = pneg %p87
        %p430 = pneg %p84
        %p431 = pneg %p108
        %p432 = pneg %p105
        %p433 = pneg %p129
        %p434 = pneg %p126
        %p435 = pneg %p150
        %p436 = pneg %p147
        %p437 = pneg %p171
        %p438 = pneg %p168
        %p439 = pneg %p192
        %p440 = pneg %p189
        %p441 = pneg %p213
        %p442 = pneg %p210
        %p443 = pneg %p234
        %p444 = pneg %p231
        %p445 = pneg %p255
        %p446 = pneg %p252
        %p447 = pneg %p283
        %p448 = pneg %p280
        %s449 = sand.u32 %s270, 1
        %s450 = scalar_lea.sflag [#allocation4], %s449
        %s451 = sand.u32 %s270, 1
        %s452 = smul.addr %s451, 8
        %s453 = scalar_lea.vmem [#allocation3], %s452
        %p454 = scmp.lt.s32.totalorder %s28, 1
        %s455 = scalar_select %p454, %s28, 1
        %p456 = scmp.lt.s32.totalorder %s29, 1
        %s457 = scalar_select %p456, %s29, 1
        %s458 = smul.addr %s455, 2
        %s459 = sadd.s32 %s457, %s458
        %s460 = smul.addr %s459, 8
        %s461 = scalar_lea.vmem %s1, %s460
        %v463 = vld [vmem:[%s461] sm:$0xff]
        %v464 = vld [vmem:[%s411] sm:$0xf]
        %v465 = vld [vmem:[%s2] sm:$0xf]
        %s466 = scalar_lea.vmem %s411, 4 [#allocation2]
        %v467 = vld [vmem:[%s466] sm:$0xf]
        %s468 = scalar_lea.vmem %s2, 4
        %v469 = vld [vmem:[%s468] sm:$0xf]
        %vm470 = vcmask 64512
        %v472 = vsel %vm470, %v467, 0
        %vm474 = vcmask 1043456
        %v476 = vsel %vm474, %v469, 0
        %478 = vmatpush.bf16.msra.mxu0 0
        %479 = vmatpush.bf16.msra.mxu0 0
        %480 = vmatpush.bf16.msra.mxu0 0
        %481 = vmatpush.bf16.msra.mxu0 0
        %482 = vmatpush.bf16.msra.mxu0 0
        %483 = vmatpush.bf16.msra.mxu0 0
        %484 = vmatpush.bf16.msra.mxu0 0
        %485 = vmatpush.bf16.msra.mxu0 %v476
        %486 = vmatmul.bf16.gmra.mxu0 %v472
        %v487 = vpop.f32.mrf.mxu0
        %v488 = vadd.f32 0.0, %v487
        %v489 = vpop.f32.mrf.mxu0
        %490 = vdwg.mxu0
        %v492 = vsel %vm470, %v464, 0
        %v495 = vsel %vm474, %v465, 0
        %497 = vmatpush.bf16.msra.mxu0 0
        %498 = vmatpush.bf16.msra.mxu0 0
        %499 = vmatpush.bf16.msra.mxu0 0
        %500 = vmatpush.bf16.msra.mxu0 0
        %501 = vmatpush.bf16.msra.mxu0 0
        %502 = vmatpush.bf16.msra.mxu0 0
        %503 = vmatpush.bf16.msra.mxu0 0
        %504 = vmatpush.bf16.msra.mxu0 %v495
        %505 = vmatmul.bf16.gmra.mxu0 %v492
        %v506 = vpop.f32.mrf.mxu0
        %v507 = vadd.f32 %v488, %v506
        %v508 = vpop.f32.mrf.mxu0
        %509 = vdwg.mxu0
        %s510 = scalar_lea.vmem %s411, 8 [#allocation2]
        %v511 = vld [vmem:[%s510] sm:$0xf]
        %s512 = scalar_lea.vmem %s2, 8
        %v513 = vld [vmem:[%s512] sm:$0xf]
        %v515 = vsel %vm470, %v511, 0
        %v518 = vsel %vm474, %v513, 0
        %520 = vmatpush.bf16.msra.mxu0 0
        %521 = vmatpush.bf16.msra.mxu0 0
        %522 = vmatpush.bf16.msra.mxu0 0
        %523 = vmatpush.bf16.msra.mxu0 0
        %524 = vmatpush.bf16.msra.mxu0 0
        %525 = vmatpush.bf16.msra.mxu0 0
        %526 = vmatpush.bf16.msra.mxu0 0
        %527 = vmatpush.bf16.msra.mxu0 %v518
        %528 = vmatmul.bf16.gmra.mxu0 %v515
        %v529 = vpop.f32.mrf.mxu0
        %v530 = vadd.f32 0.0, %v529
        %v531 = vpop.f32.mrf.mxu0
        %532 = vdwg.mxu0
        %v533 = vadd.f32 %v507, %v530
        %s534 = scalar_lea.vmem %s411, 12 [#allocation2]
        %v535 = vld [vmem:[%s534] sm:$0xf]
        %s536 = scalar_lea.vmem %s2, 12
        %v537 = vld [vmem:[%s536] sm:$0xf]
        %v539 = vsel %vm470, %v535, 0
        %v542 = vsel %vm474, %v537, 0
        %544 = vmatpush.bf16.msra.mxu0 0
        %545 = vmatpush.bf16.msra.mxu0 0
        %546 = vmatpush.bf16.msra.mxu0 0
        %547 = vmatpush.bf16.msra.mxu0 0
        %548 = vmatpush.bf16.msra.mxu0 0
        %549 = vmatpush.bf16.msra.mxu0 0
        %550 = vmatpush.bf16.msra.mxu0 0
        %551 = vmatpush.bf16.msra.mxu0 %v542
        %552 = vmatmul.bf16.gmra.mxu0 %v539
        %v553 = vpop.f32.mrf.mxu0
        %v554 = vadd.f32 0.0, %v553
        %v555 = vpop.f32.mrf.mxu0
        %556 = vdwg.mxu0
        %v557 = vadd.f32 %v533, %v554
        %v558 = vadd.f32 %v463, %v557
        %v559 = vld [vmem:[%s3] sm:$0x1]
        %v561 = vperm.slane %v559, 0
        %v563 = vadd.f32 %v558, %v561
        %v564 = vld [vmem:[%s4] sm:$0x1]
        %v565 = vld [vmem:[%s5] sm:$0x1]
        %vm566 = vcmask 261120
        %v567 = vsel %vm566, %v563, 0.0
        %568 = vadd.xlane.f32.xlu0 %v567
        %v569 = vpop.xlane.xlu0 %568
        %v570 = vrcp.pop 32.0
        %v571 = vmul.f32 32.0, %v570
        %v572 = vsub.f32 1.0, %v571
        %v573 = vmul.f32 %v570, %v572
        %v574 = vadd.f32 %v570, %v573
        %vm575 = vweird.f32 %v570
        %v576 = vsel %vm575, %v570, %v574
        %v577 = vmul.f32 %v569, %v576
        %v578 = vsub.f32 %v563, %v577
        %v579 = vmul.f32 %v578, %v578
        %v580 = vsel %vm566, %v579, 0.0
        %581 = vadd.xlane.f32.xlu0 %v580
        %v582 = vpop.xlane.xlu0 %581
        %v583 = vmul.f32 %v582, %v576
        %v584 = vadd.f32 %v583, 1e-05
        %v585 = vrsqrt.pop %v584
        %v586 = vmul.f32 %v585, %v584
        %v587 = vmul.f32 %v586, %v585
        %v588 = vmul.f32 0.5, %v587
        %v589 = vsub.f32 1.5, %v588
        %v590 = vmul.f32 %v585, %v589
        %vm591 = vweird.f32 %v584
        %vm592 = vweird.f32 %v585
        %vm593 = vmor %vm591, %vm592
        %v594 = vsel %vm593, %v585, %v590
        %v595 = vmul.f32 %v578, %v594
        %v597 = vperm.slane %v564, 0
        %v599 = vmul.f32 %v595, %v597
        %v601 = vperm.slane %v565, 0
        %v603 = vadd.f32 %v599, %v601
        %v604 = vpack.c.bf16 %v603, %v603
        %v605 = vld [vmem:[%s6] sm:$0xf]
        %v606 = vld [vmem:[%s6 + $0x4] sm:$0xf]
        %v607 = vld [vmem:[%s6 + $0x8] sm:$0xf]
        %v608 = vld [vmem:[%s6 + $0xc] sm:$0xf]
        %v609 = vld [vmem:[%s7] sm:$0x1]
        %v611 = vperm.slane %v609, 0
        %v617 = vunpack.c.l.b16 %v605
        %v618 = vunpack.c.l.b16 %v606
        %v619 = vunpack.c.l.b16 %v607
        %v620 = vunpack.c.l.b16 %v608
        %v621 = vpack.c.b16 %v618, %v617
        %v622 = vpack.c.b16 %v620, %v619
        %v626 = vsel %vm566, %v604, 0
        %628 = vmatpush.bf16.msra.mxu0 0
        %629 = vmatpush.bf16.msra.mxu0 0
        %630 = vmatpush.bf16.msra.mxu0 0
        %631 = vmatpush.bf16.msra.mxu0 0
        %632 = vmatpush.bf16.msra.mxu0 0
        %633 = vmatpush.bf16.msra.mxu0 0
        %634 = vmatpush.bf16.msra.mxu0 %v622
        %635 = vmatpush.bf16.msra.mxu0 %v621
        %636 = vmatmul.bf16.gmra.mxu0 %v626
        %v637 = vpop.f32.mrf.mxu0
        %v638 = vadd.f32 %v611, %v637
        %v639 = vpop.f32.mrf.mxu0
        %640 = vdwg.mxu0
        %v641 = vmul.f32 %v638, 0.5
        %v642 = vmul.f32 %v638, 0.044715
        %v643 = vmul.f32 %v642, %v638
        %v644 = vmul.f32 %v643, %v638
        %v645 = vadd.f32 %v638, %v644
        %v646 = vmul.f32 %v645, 0.7978846
        %v647 = vtanh.pop %v646
        %v648 = vadd.f32 %v647, 1.0
        %v649 = vmul.f32 %v641, %v648
        %v650 = vpack.c.bf16 %v649, %v649
        %v651 = vld [vmem:[%s8] sm:$0xf]
        %v652 = vld [vmem:[%s8 + $0x4] sm:$0xf]
        %v653 = vld [vmem:[%s8 + $0x8] sm:$0xf]
        %v654 = vld [vmem:[%s8 + $0xc] sm:$0xf]
        %v655 = vld [vmem:[%s8 + $0x10] sm:$0xf]
        %v656 = vld [vmem:[%s8 + $0x14] sm:$0xf]
        %v657 = vld [vmem:[%s8 + $0x18] sm:$0xf]
        %v658 = vld [vmem:[%s8 + $0x1c] sm:$0xf]
        %v659 = vld [vmem:[%s8 + $0x20] sm:$0xf]
        %v660 = vld [vmem:[%s8 + $0x24] sm:$0xf]
        %v661 = vld [vmem:[%s8 + $0x28] sm:$0xf]
        %v662 = vld [vmem:[%s8 + $0x2c] sm:$0xf]
        %v663 = vld [vmem:[%s8 + $0x30] sm:$0xf]
        %v664 = vld [vmem:[%s8 + $0x34] sm:$0xf]
        %v665 = vld [vmem:[%s8 + $0x38] sm:$0xf]
        %v666 = vld [vmem:[%s8 + $0x3c] sm:$0xf]
        %v667 = vld [vmem:[%s9] sm:$0x1]
        %v669 = vperm.slane %v667, 0
        %v687 = vunpack.c.l.b16 %v651
        %v688 = vunpack.c.l.b16 %v652
        %v689 = vunpack.c.l.b16 %v653
        %v690 = vunpack.c.l.b16 %v654
        %v691 = vunpack.c.l.b16 %v655
        %v692 = vunpack.c.l.b16 %v656
        %v693 = vunpack.c.l.b16 %v657
        %v694 = vunpack.c.l.b16 %v658
        %v695 = vunpack.c.l.b16 %v659
        %v696 = vunpack.c.l.b16 %v660
        %v697 = vunpack.c.l.b16 %v661
        %v698 = vunpack.c.l.b16 %v662
        %v699 = vunpack.c.l.b16 %v663
        %v700 = vunpack.c.l.b16 %v664
        %v701 = vunpack.c.l.b16 %v665
        %v702 = vunpack.c.l.b16 %v666
        %v703 = vpack.c.b16 %v688, %v687
        %v704 = vpack.c.b16 %v690, %v689
        %v705 = vpack.c.b16 %v692, %v691
        %v706 = vpack.c.b16 %v694, %v693
        %v707 = vpack.c.b16 %v696, %v695
        %v708 = vpack.c.b16 %v698, %v697
        %v709 = vpack.c.b16 %v700, %v699
        %v710 = vpack.c.b16 %v702, %v701
        %719 = vmatpush.bf16.msra.mxu0 %v710
        %720 = vmatpush.bf16.msra.mxu0 %v709
        %721 = vmatpush.bf16.msra.mxu0 %v708
        %722 = vmatpush.bf16.msra.mxu0 %v707
        %723 = vmatpush.bf16.msra.mxu0 %v706
        %724 = vmatpush.bf16.msra.mxu0 %v705
        %725 = vmatpush.bf16.msra.mxu0 %v704
        %726 = vmatpush.bf16.msra.mxu0 %v703
        %727 = vmatmul.bf16.gmra.mxu0 %v650
        %v728 = vpop.f32.mrf.mxu0
        %v729 = vadd.f32 %v669, %v728
        %v730 = vpop.f32.mrf.mxu0
        %731 = vdwg.mxu0
        %v732 = vadd.f32 %v563, %v729
        %733 = vst.msk [vmem:[%s453] sm:$0xff] %vm566, %v732
        %s734 = sand.u32 %s270, 1
        %s735 = scalar_lea.sflag [#allocation4], %s734
        %s736 = sand.u32 %s270, 1
        %s737 = smul.addr %s736, 8
        %s738 = scalar_lea.vmem [#allocation3], %s737
        // Predicated region
        $region102: #{transformer_block.5} parent=96 // pred_check
          %p739 = pneg %p280
        $region103: #{transformer_block.5} parent=96 // pred_check_branch
          %741 = sbr.rel (%p739) target = $region105
        $region104: #{transformer_block.5} parent=96 // pred_region
          %743 = vsyncadd %s735, 0
          %s744 = smul.addr %s28, 2
          %s745 = sadd.s32 %s29, %s744
          %s746 = smul.addr %s745, 8
          %s747 = scalar_lea.hbm %s10, %s746
          %s749 = sshll.u32 %s738, 4
          %s750 = int_to_ptr.vmem [resolvable:$true] %s749
          %s751 = sshll.u32 %s747, 4
          %s752 = int_to_ptr.hbm [resolvable:$true] %s751
          %754 = dma.vmem_to_hbm [thread:$0]  %s750, 128, %s752, %s735
        $region105: #{transformer_block.5} parent=96 // pred_fallthru
          _
      $region97: #{transformer_block.5} parent=5 // pred_fallthru
        _
      %p755 = scmp.le.s32.totalorder 2, %s19
      // Predicated region
      $region106: #{transformer_block.5} parent=5 // pred_check
        %p756 = pneg %p755
      $region107: #{transformer_block.5} parent=5 // pred_check_branch
        %758 = sbr.rel (%p756) target = $region109
      $region108: #{transformer_block.5} parent=5 // pred_region
        %s759 = ssub.s32 %s19, 2
        // Predicated region
        $region110: #{transformer_block.5} parent=108 // pred_check
          %p760 = pneg %p286
        $region111: #{transformer_block.5} parent=108 // pred_check_branch
          %762 = sbr.rel (%p760) target = $region113
        $region112: #{transformer_block.5} parent=108 // pred_region
          %s763 = sand.u32 %s271, 1
          %s764 = scalar_lea.sflag [#allocation4], %s763
          %s765 = sand.u32 %s271, 1
          %s766 = smul.addr %s765, 8
          %s767 = scalar_lea.vmem [#allocation3], %s766
          %769 = dma.done %s764, 128
        $region113: #{transformer_block.5} parent=108 // pred_fallthru
          _
      $region109: #{transformer_block.5} parent=5 // pred_fallthru
        _
    $region6: #{transformer_block.5} parent=1 // loop_footer
      %s23 = sadd.s32 1, %s19
    $region7: #{transformer_block.5} parent=1 // loop_footer_branch
      %18 = sbr.rel target = $region3
    $region8: #{transformer_block.5} parent=1 // loop_exit
      _
    %770 = vsyncpa [#allocation4], 1
    %s771 = scalar_lea.sflag [#allocation4], 1
    %772 = vsyncpa %s771, 1

// kernel: transformer_block.4
$region0: #{transformer_block.4}
  #allocation0 [shape = 'u32[]', space=smem, size = 0x4, offset = 0x4, fixed_abs, tag = 'smem constant byte address 0x4 - core index']
  #allocation1 [shape = 'u32[72,128]{1,0:T(1,128)}', space=vmem, size = 0x9000, scoped, tag = 'internal scratch']
  #allocation2 [shape = 'f32[4,8,1]{2,1,0:T(8,128)}', space=vmem, size = 0x4000, scoped, tag = 'scratch operand']
  #allocation3 [shape = 'f32[4,8,1]{2,1,0:T(8,128)}', space=vmem, size = 0x4000, scoped, tag = 'scratch operand']
  #allocation4 [shape = 'f32[4,8,8]{2,1,0:T(8,128)}', space=vmem, size = 0x4000, scoped, tag = 'scratch operand']
  %s0 = inlined_call_operand.vmem [shape: bf16[2,4,16,8], index: 0, kind: input, shape index: {}]
  %s1 = inlined_call_operand.vmem [shape: bf16[2,4,16,8], index: 1, kind: input, shape index: {}]
  %s2 = inlined_call_operand.vmem [shape: bf16[2,4,16,8], index: 2, kind: input, shape index: {}]
  %s3 = inlined_call_operand.vmem [shape: bf16[2,4,16,8], index: 3, kind: output, shape index: {}]
  %s4 = sld [smem:[#allocation0]]
  $region217: #{transformer_block.4} parent=0
    _
  %s6 = ssub.s32 1, %s4
  %s7 = scalar_select 0, %s6, %s4
  $region1: #{transformer_block.4} parent=0
    #allocation5 [shape = 'u8[16384]{0}', space=vmem, size = 0x4000, scoped, tag = 'input window, operand 0']
    #allocation6 [shape = 'u8[16384]{0}', space=vmem, size = 0x4000, scoped, tag = 'input window, operand 1']
    #allocation7 [shape = 'u8[16384]{0}', space=vmem, size = 0x4000, scoped, tag = 'input window, operand 2']
    #allocation8 [shape = 'u8[16384]{0}', space=vmem, size = 0x4000, scoped, tag = 'output window, operand 0']
    loop: start=0, step=1, limit=10
    $region2: #{transformer_block.4} parent=1 // loop_pre_header
      _
    $region3: #{transformer_block.4} parent=1 // loop_header
      %s9 = sphi 0, %s13
      %p10 = scmp.ge.s32.totalorder %s9, 10
      %s16 = sphi 0, %s35
      %s17 = sphi 0, %s31
      %s18 = sphi 0, %s27
      %s19 = sphi 0, %s16
      %s20 = sphi 0, %s17
      %s21 = sphi 0, %s18
      %s22 = sphi 0, %s19
      %s23 = sphi 0, %s20
      %s24 = sphi 0, %s21
      %s40 = sphi 0, %s42
      %s43 = sphi 0, %s40
      %s44 = sphi 0, %s43
      %s60 = sphi 0, %s44
      %s68 = sphi 0, %s70
      %s71 = sphi 0, %s68
      %s72 = sphi 0, %s71
      %s88 = sphi 0, %s72
      %s96 = sphi 0, %s98
      %s99 = sphi 0, %s96
      %s100 = sphi 0, %s99
      %s116 = sphi 0, %s100
      %s124 = sphi 0, %s126
      %s127 = sphi 0, %s124
      %s128 = sphi 0, %s127
      %s144 = sphi 0, %s128
    $region4: #{transformer_block.4} parent=1 // loop_header_branch
      %12 = sbr.rel (%p10) target = $region8
    $region5: #{transformer_block.4} parent=1 // loop_body
      %s14 = ssub.s32 %s9, 1
      %s15 = ssub.s32 %s9, 2
      %s25 = sadd.s32 1, %s18
      %p26 = scmp.ge.s32.totalorder %s25, 2
      %s27 = scalar_select %p26, 0, %s25
      %s28 = sadd.s32 1, %s17
      %s29 = scalar_select %p26, %s28, %s17
      %p30 = scmp.ge.s32.totalorder %s29, 2
      %s31 = scalar_select %p30, 0, %s29
      %s32 = sadd.s32 1, %s16
      %s33 = scalar_select %p30, %s32, %s16
      %p34 = scmp.ge.s32.totalorder %s33, 2
      %s35 = scalar_select %p34, 0, %s33
      %s36 = ssub.s32 %s16, %s35
      %s37 = ssub.s32 %s17, %s31
      %s38 = sor.u32 %s36, %s37
      %p39 = scmp.eq.s32.totalorder %s38, 0
      %s41 = sadd.s32 %s40, 1
      %s42 = scalar_select %p39, %s40, %s41
      %p45 = pneg %p39
      %p46 = scmp.eq.s32.totalorder %s9, 7
      %p47 = por %p45, %p46
      %p48 = scmp.ne.s32.totalorder %s40, %s43
      %p49 = scmp.eq.s32.totalorder %s9, 0
      %p50 = por %p48, %p49
      %p51 = scmp.ne.s32.totalorder %s40, %s43
      %p52 = scmp.eq.s32.totalorder %s14, 7
      %p53 = por %p51, %p52
      %p54 = scmp.ne.s32.totalorder %s43, %s44
      %p55 = scmp.eq.s32.totalorder %s14, 0
      %p56 = por %p54, %p55
      %p57 = scmp.ne.s32.totalorder %s43, %s44
      %p58 = scmp.eq.s32.totalorder %s15, 7
      %p59 = por %p57, %p58
      %p61 = scmp.ne.s32.totalorder %s44, %s60
      %p62 = scmp.eq.s32.totalorder %s15, 0
      %p63 = por %p61, %p62
      %s64 = ssub.s32 %s16, %s35
      %s65 = ssub.s32 %s18, %s27
      %s66 = sor.u32 %s64, %s65
      %p67 = scmp.eq.s32.totalorder %s66, 0
      %s69 = sadd.s32 %s68, 1
      %s70 = scalar_select %p67, %s68, %s69
      %p73 = pneg %p67
      %p74 = scmp.eq.s32.totalorder %s9, 7
      %p75 = por %p73, %p74
      %p76 = scmp.ne.s32.totalorder %s68, %s71
      %p77 = scmp.eq.s32.totalorder %s9, 0
      %p78 = por %p76, %p77
      %p79 = scmp.ne.s32.totalorder %s68, %s71
      %p80 = scmp.eq.s32.totalorder %s14, 7
      %p81 = por %p79, %p80
      %p82 = scmp.ne.s32.totalorder %s71, %s72
      %p83 = scmp.eq.s32.totalorder %s14, 0
      %p84 = por %p82, %p83
      %p85 = scmp.ne.s32.totalorder %s71, %s72
      %p86 = scmp.eq.s32.totalorder %s15, 7
      %p87 = por %p85, %p86
      %p89 = scmp.ne.s32.totalorder %s72, %s88
      %p90 = scmp.eq.s32.totalorder %s15, 0
      %p91 = por %p89, %p90
      %s92 = ssub.s32 %s16, %s35
      %s93 = ssub.s32 %s18, %s27
      %s94 = sor.u32 %s92, %s93
      %p95 = scmp.eq.s32.totalorder %s94, 0
      %s97 = sadd.s32 %s96, 1
      %s98 = scalar_select %p95, %s96, %s97
      %p101 = pneg %p95
      %p102 = scmp.eq.s32.totalorder %s9, 7
      %p103 = por %p101, %p102
      %p104 = scmp.ne.s32.totalorder %s96, %s99
      %p105 = scmp.eq.s32.totalorder %s9, 0
      %p106 = por %p104, %p105
      %p107 = scmp.ne.s32.totalorder %s96, %s99
      %p108 = scmp.eq.s32.totalorder %s14, 7
      %p109 = por %p107, %p108
      %p110 = scmp.ne.s32.totalorder %s99, %s100
      %p111 = scmp.eq.s32.totalorder %s14, 0
      %p112 = por %p110, %p111
      %p113 = scmp.ne.s32.totalorder %s99, %s100
      %p114 = scmp.eq.s32.totalorder %s15, 7
      %p115 = por %p113, %p114
      %p117 = scmp.ne.s32.totalorder %s100, %s116
      %p118 = scmp.eq.s32.totalorder %s15, 0
      %p119 = por %p117, %p118
      %s120 = ssub.s32 %s16, %s35
      %s121 = ssub.s32 %s17, %s31
      %s122 = sor.u32 %s120, %s121
      %p123 = scmp.eq.s32.totalorder %s122, 0
      %s125 = sadd.s32 %s124, 1
      %s126 = scalar_select %p123, %s124, %s125
      %p129 = pneg %p123
      %p130 = scmp.eq.s32.totalorder %s9, 7
      %p131 = por %p129, %p130
      %p132 = scmp.ne.s32.totalorder %s124, %s127
      %p133 = scmp.eq.s32.totalorder %s9, 0
      %p134 = por %p132, %p133
      %p135 = scmp.ne.s32.totalorder %s124, %s127
      %p136 = scmp.eq.s32.totalorder %s14, 7
      %p137 = por %p135, %p136
      %p138 = scmp.ne.s32.totalorder %s127, %s128
      %p139 = scmp.eq.s32.totalorder %s14, 0
      %p140 = por %p138, %p139
      %p141 = scmp.ne.s32.totalorder %s127, %s128
      %p142 = scmp.eq.s32.totalorder %s15, 7
      %p143 = por %p141, %p142
      %p145 = scmp.ne.s32.totalorder %s128, %s144
      %p146 = scmp.eq.s32.totalorder %s15, 0
      %p147 = por %p145, %p146
      %p148 = scmp.le.s32.totalorder 1, %s9
      %p149 = scmp.lt.s32.totalorder %s9, 9
      %p150 = pnand %p148, %p149
      %p151 = pneg %p150
      // Predicated region
      $region9: #{transformer_block.4} parent=5 // pred_check
        _
      $region10: #{transformer_block.4} parent=5 // pred_check_branch
        %153 = sbr.rel (%p150) target = $region12
      $region11: #{transformer_block.4} parent=5 // pred_region
        %s154 = ssub.s32 %s9, 1
      $region12: #{transformer_block.4} parent=5 // pred_fallthru
        _
      %p155 = scmp.lt.s32.totalorder %s9, 8
      // Predicated region
      $region13: #{transformer_block.4} parent=5 // pred_check
        %p156 = pneg %p155
      $region14: #{transformer_block.4} parent=5 // pred_check_branch
        %158 = sbr.rel (%p156) target = $region16
      $region15: #{transformer_block.4} parent=5 // pred_region
        // Predicated region
        $region17: #{transformer_block.4} parent=15 // pred_check
          %p159 = pneg %p50
        $region18: #{transformer_block.4} parent=15 // pred_check_branch
          %161 = sbr.rel (%p159) target = $region20
        $region19: #{transformer_block.4} parent=15 // pred_region
          %s162 = sand.u32 %s40, 1
          %s163 = sand.u32 %s40, 1
          %s164 = smul.addr %s163, 16
          %s165 = scalar_lea.vmem [#allocation5], %s164
          %s166 = smul.addr %s16, 8
          %s167 = sadd.s32 %s17, %s166
          %s168 = smul.addr %s167, 4
          %s169 = scalar_lea.vmem %s0, %s168
          // Predicated region
          $region21: #{transformer_block.4} parent=19 // pred_check
            _
          $region22: #{transformer_block.4} parent=19 // pred_check_branch
            %171 = sbr.rel (0) target = $region24
          $region23: #{transformer_block.4} parent=19 // pred_region
            // Predicated region
            $region25: #{transformer_block.4} parent=23 // pred_check
              _
            $region26: #{transformer_block.4} parent=23 // pred_check_branch
              %173 = sbr.rel target = $region28
            $region27: #{transformer_block.4} parent=23 // pred_region
              // Predicated region
              $region40: #{transformer_block.4} parent=27 // pred_check
                _
              $region41: #{transformer_block.4} parent=27 // pred_check_branch
                %195 = sbr.rel (0) target = $region43
              $region42: #{transformer_block.4} parent=27 // pred_region
                loop: start=0, step=1, limit=1
                $region44: #{transformer_block.4} parent=42 // loop_pre_header
                  _
                $region45: #{transformer_block.4} parent=42 // loop_header
                  %s197 = sphi 0, %s201
                  %p198 = scmp.ge.s32.totalorder %s197, 1
                  %s202 = sphi %s169, %s169
                  %s203 = sphi %s165, %s165
                $region46: #{transformer_block.4} parent=42 // loop_header_branch
                  %200 = sbr.rel (%p198) target = $region50
                $region47: #{transformer_block.4} parent=42 // loop_body
                  _
                $region48: #{transformer_block.4} parent=42 // loop_footer
                  %s201 = sadd.s32 1, %s197
                $region49: #{transformer_block.4} parent=42 // loop_footer_branch
                  %196 = sbr.rel target = $region45
                $region50: #{transformer_block.4} parent=42 // loop_exit
                  _
                %s205 = ssub.s32 16, 1
                loop: start=0, step=1, limit=1
                $region51: #{transformer_block.4} parent=42 // loop_pre_header
                  _
                $region52: #{transformer_block.4} parent=42 // loop_header
                  %s207 = sphi 0, %s211
                  %p208 = scmp.ge.s32.totalorder %s207, 1
                  %s212 = sphi %s169, %s169
                  %s213 = sphi %s165, %s165
                $region53: #{transformer_block.4} parent=42 // loop_header_branch
                  %210 = sbr.rel (%p208) target = $region57
                $region54: #{transformer_block.4} parent=42 // loop_body
                  %v214 = vld [vmem:[%s212] sm:%s205]
                  %215 = vst [vmem:[%s213] sm:%s205] %v214
                  %v216 = vld [vmem:[%s212 + $0x8] sm:%s205]
                  %217 = vst [vmem:[%s213 + $0x4] sm:%s205] %v216
                  %v218 = vld [vmem:[%s212 + $0x10] sm:%s205]
                  %219 = vst [vmem:[%s213 + $0x8] sm:%s205] %v218
                  %v220 = vld [vmem:[%s212 + $0x18] sm:%s205]
                  %221 = vst [vmem:[%s213 + $0xc] sm:%s205] %v220
                $region55: #{transformer_block.4} parent=42 // loop_footer
                  %s211 = sadd.s32 1, %s207
                $region56: #{transformer_block.4} parent=42 // loop_footer_branch
                  %206 = sbr.rel target = $region52
                $region57: #{transformer_block.4} parent=42 // loop_exit
                  _
              $region43: #{transformer_block.4} parent=27 // pred_fallthru
                _
            $region28: #{transformer_block.4} parent=23 // pred_fallthru
              _
            // Predicated region
            $region29: #{transformer_block.4} parent=23 // pred_check
              _
            $region30: #{transformer_block.4} parent=23 // pred_check_branch
              %175 = sbr.rel (0) target = $region32
            $region31: #{transformer_block.4} parent=23 // pred_region
              %s177 = ssub.s32 16, 1
              loop: start=0, step=1, limit=1
              $region33: #{transformer_block.4} parent=31 // loop_pre_header
                _
              $region34: #{transformer_block.4} parent=31 // loop_header
                %s179 = sphi 0, %s183
                %p180 = scmp.ge.s32.totalorder %s179, 1
                %s184 = sphi %s169, %s169
                %s185 = sphi %s165, %s165
              $region35: #{transformer_block.4} parent=31 // loop_header_branch
                %182 = sbr.rel (%p180) target = $region39
              $region36: #{transformer_block.4} parent=31 // loop_body
                %v186 = vld [vmem:[%s184] sm:%s177]
                %187 = vst [vmem:[%s185] sm:%s177] %v186
                %v188 = vld [vmem:[%s184 + $0x8] sm:%s177]
                %189 = vst [vmem:[%s185 + $0x4] sm:%s177] %v188
                %v190 = vld [vmem:[%s184 + $0x10] sm:%s177]
                %191 = vst [vmem:[%s185 + $0x8] sm:%s177] %v190
                %v192 = vld [vmem:[%s184 + $0x18] sm:%s177]
                %193 = vst [vmem:[%s185 + $0xc] sm:%s177] %v192
              $region37: #{transformer_block.4} parent=31 // loop_footer
                %s183 = sadd.s32 1, %s179
              $region38: #{transformer_block.4} parent=31 // loop_footer_branch
                %178 = sbr.rel target = $region34
              $region39: #{transformer_block.4} parent=31 // loop_exit
                _
            $region32: #{transformer_block.4} parent=23 // pred_fallthru
              _
          $region24: #{transformer_block.4} parent=19 // pred_fallthru
            _
          %222 = vnop
        $region20: #{transformer_block.4} parent=15 // pred_fallthru
          _
        // Predicated region
        $region58: #{transformer_block.4} parent=15 // pred_check
          %p223 = pneg %p78
        $region59: #{transformer_block.4} parent=15 // pred_check_branch
          %225 = sbr.rel (%p223) target = $region61
        $region60: #{transformer_block.4} parent=15 // pred_region
          %s226 = sand.u32 %s68, 1
          %s227 = sand.u32 %s68, 1
          %s228 = smul.addr %s227, 16
          %s229 = scalar_lea.vmem [#allocation6], %s228
          %s230 = smul.addr %s16, 8
          %s231 = sadd.s32 %s18, %s230
          %s232 = smul.addr %s231, 4
          %s233 = scalar_lea.vmem %s1, %s232
          // Predicated region
          $region62: #{transformer_block.4} parent=60 // pred_check
            _
          $region63: #{transformer_block.4} parent=60 // pred_check_branch
            %235 = sbr.rel (0) target = $region65
          $region64: #{transformer_block.4} parent=60 // pred_region
            // Predicated region
            $region66: #{transformer_block.4} parent=64 // pred_check
              _
            $region67: #{transformer_block.4} parent=64 // pred_check_branch
              %237 = sbr.rel target = $region69
            $region68: #{transformer_block.4} parent=64 // pred_region
              // Predicated region
              $region81: #{transformer_block.4} parent=68 // pred_check
                _
              $region82: #{transformer_block.4} parent=68 // pred_check_branch
                %259 = sbr.rel (0) target = $region84
              $region83: #{transformer_block.4} parent=68 // pred_region
                loop: start=0, step=1, limit=1
                $region85: #{transformer_block.4} parent=83 // loop_pre_header
                  _
                $region86: #{transformer_block.4} parent=83 // loop_header
                  %s261 = sphi 0, %s265
                  %p262 = scmp.ge.s32.totalorder %s261, 1
                  %s266 = sphi %s233, %s233
                  %s267 = sphi %s229, %s229
                $region87: #{transformer_block.4} parent=83 // loop_header_branch
                  %264 = sbr.rel (%p262) target = $region91
                $region88: #{transformer_block.4} parent=83 // loop_body
                  _
                $region89: #{transformer_block.4} parent=83 // loop_footer
                  %s265 = sadd.s32 1, %s261
                $region90: #{transformer_block.4} parent=83 // loop_footer_branch
                  %260 = sbr.rel target = $region86
                $region91: #{transformer_block.4} parent=83 // loop_exit
                  _
                %s269 = ssub.s32 16, 1
                loop: start=0, step=1, limit=1
                $region92: #{transformer_block.4} parent=83 // loop_pre_header
                  _
                $region93: #{transformer_block.4} parent=83 // loop_header
                  %s271 = sphi 0, %s275
                  %p272 = scmp.ge.s32.totalorder %s271, 1
                  %s276 = sphi %s233, %s233
                  %s277 = sphi %s229, %s229
                $region94: #{transformer_block.4} parent=83 // loop_header_branch
                  %274 = sbr.rel (%p272) target = $region98
                $region95: #{transformer_block.4} parent=83 // loop_body
                  %v278 = vld [vmem:[%s276] sm:%s269]
                  %279 = vst [vmem:[%s277] sm:%s269] %v278
                  %v280 = vld [vmem:[%s276 + $0x8] sm:%s269]
                  %281 = vst [vmem:[%s277 + $0x4] sm:%s269] %v280
                  %v282 = vld [vmem:[%s276 + $0x10] sm:%s269]
                  %283 = vst [vmem:[%s277 + $0x8] sm:%s269] %v282
                  %v284 = vld [vmem:[%s276 + $0x18] sm:%s269]
                  %285 = vst [vmem:[%s277 + $0xc] sm:%s269] %v284
                $region96: #{transformer_block.4} parent=83 // loop_footer
                  %s275 = sadd.s32 1, %s271
                $region97: #{transformer_block.4} parent=83 // loop_footer_branch
                  %270 = sbr.rel target = $region93
                $region98: #{transformer_block.4} parent=83 // loop_exit
                  _
              $region84: #{transformer_block.4} parent=68 // pred_fallthru
                _
            $region69: #{transformer_block.4} parent=64 // pred_fallthru
              _
            // Predicated region
            $region70: #{transformer_block.4} parent=64 // pred_check
              _
            $region71: #{transformer_block.4} parent=64 // pred_check_branch
              %239 = sbr.rel (0) target = $region73
            $region72: #{transformer_block.4} parent=64 // pred_region
              %s241 = ssub.s32 16, 1
              loop: start=0, step=1, limit=1
              $region74: #{transformer_block.4} parent=72 // loop_pre_header
                _
              $region75: #{transformer_block.4} parent=72 // loop_header
                %s243 = sphi 0, %s247
                %p244 = scmp.ge.s32.totalorder %s243, 1
                %s248 = sphi %s233, %s233
                %s249 = sphi %s229, %s229
              $region76: #{transformer_block.4} parent=72 // loop_header_branch
                %246 = sbr.rel (%p244) target = $region80
              $region77: #{transformer_block.4} parent=72 // loop_body
                %v250 = vld [vmem:[%s248] sm:%s241]
                %251 = vst [vmem:[%s249] sm:%s241] %v250
                %v252 = vld [vmem:[%s248 + $0x8] sm:%s241]
                %253 = vst [vmem:[%s249 + $0x4] sm:%s241] %v252
                %v254 = vld [vmem:[%s248 + $0x10] sm:%s241]
                %255 = vst [vmem:[%s249 + $0x8] sm:%s241] %v254
                %v256 = vld [vmem:[%s248 + $0x18] sm:%s241]
                %257 = vst [vmem:[%s249 + $0xc] sm:%s241] %v256
              $region78: #{transformer_block.4} parent=72 // loop_footer
                %s247 = sadd.s32 1, %s243
              $region79: #{transformer_block.4} parent=72 // loop_footer_branch
                %242 = sbr.rel target = $region75
              $region80: #{transformer_block.4} parent=72 // loop_exit
                _
            $region73: #{transformer_block.4} parent=64 // pred_fallthru
              _
          $region65: #{transformer_block.4} parent=60 // pred_fallthru
            _
          %286 = vnop
        $region61: #{transformer_block.4} parent=15 // pred_fallthru
          _
        // Predicated region
        $region99: #{transformer_block.4} parent=15 // pred_check
          %p287 = pneg %p106
        $region100: #{transformer_block.4} parent=15 // pred_check_branch
          %289 = sbr.rel (%p287) target = $region102
        $region101: #{transformer_block.4} parent=15 // pred_region
          %s290 = sand.u32 %s96, 1
          %s291 = sand.u32 %s96, 1
          %s292 = smul.addr %s291, 16
          %s293 = scalar_lea.vmem [#allocation7], %s292
          %s294 = smul.addr %s16, 8
          %s295 = sadd.s32 %s18, %s294
          %s296 = smul.addr %s295, 4
          %s297 = scalar_lea.vmem %s2, %s296
          // Predicated region
          $region103: #{transformer_block.4} parent=101 // pred_check
            _
          $region104: #{transformer_block.4} parent=101 // pred_check_branch
            %299 = sbr.rel (0) target = $region106
          $region105: #{transformer_block.4} parent=101 // pred_region
            // Predicated region
            $region107: #{transformer_block.4} parent=105 // pred_check
              _
            $region108: #{transformer_block.4} parent=105 // pred_check_branch
              %301 = sbr.rel target = $region110
            $region109: #{transformer_block.4} parent=105 // pred_region
              // Predicated region
              $region122: #{transformer_block.4} parent=109 // pred_check
                _
              $region123: #{transformer_block.4} parent=109 // pred_check_branch
                %323 = sbr.rel (0) target = $region125
              $region124: #{transformer_block.4} parent=109 // pred_region
                loop: start=0, step=1, limit=1
                $region126: #{transformer_block.4} parent=124 // loop_pre_header
                  _
                $region127: #{transformer_block.4} parent=124 // loop_header
                  %s325 = sphi 0, %s329
                  %p326 = scmp.ge.s32.totalorder %s325, 1
                  %s330 = sphi %s297, %s297
                  %s331 = sphi %s293, %s293
                $region128: #{transformer_block.4} parent=124 // loop_header_branch
                  %328 = sbr.rel (%p326) target = $region132
                $region129: #{transformer_block.4} parent=124 // loop_body
                  _
                $region130: #{transformer_block.4} parent=124 // loop_footer
                  %s329 = sadd.s32 1, %s325
                $region131: #{transformer_block.4} parent=124 // loop_footer_branch
                  %324 = sbr.rel target = $region127
                $region132: #{transformer_block.4} parent=124 // loop_exit
                  _
                %s333 = ssub.s32 16, 1
                loop: start=0, step=1, limit=1
                $region133: #{transformer_block.4} parent=124 // loop_pre_header
                  _
                $region134: #{transformer_block.4} parent=124 // loop_header
                  %s335 = sphi 0, %s339
                  %p336 = scmp.ge.s32.totalorder %s335, 1
                  %s340 = sphi %s297, %s297
                  %s341 = sphi %s293, %s293
                $region135: #{transformer_block.4} parent=124 // loop_header_branch
                  %338 = sbr.rel (%p336) target = $region139
                $region136: #{transformer_block.4} parent=124 // loop_body
                  %v342 = vld [vmem:[%s340] sm:%s333]
                  %343 = vst [vmem:[%s341] sm:%s333] %v342
                  %v344 = vld [vmem:[%s340 + $0x8] sm:%s333]
                  %345 = vst [vmem:[%s341 + $0x4] sm:%s333] %v344
                  %v346 = vld [vmem:[%s340 + $0x10] sm:%s333]
                  %347 = vst [vmem:[%s341 + $0x8] sm:%s333] %v346
                  %v348 = vld [vmem:[%s340 + $0x18] sm:%s333]
                  %349 = vst [vmem:[%s341 + $0xc] sm:%s333] %v348
                $region137: #{transformer_block.4} parent=124 // loop_footer
                  %s339 = sadd.s32 1, %s335
                $region138: #{transformer_block.4} parent=124 // loop_footer_branch
                  %334 = sbr.rel target = $region134
                $region139: #{transformer_block.4} parent=124 // loop_exit
                  _
              $region125: #{transformer_block.4} parent=109 // pred_fallthru
                _
            $region110: #{transformer_block.4} parent=105 // pred_fallthru
              _
            // Predicated region
            $region111: #{transformer_block.4} parent=105 // pred_check
              _
            $region112: #{transformer_block.4} parent=105 // pred_check_branch
              %303 = sbr.rel (0) target = $region114
            $region113: #{transformer_block.4} parent=105 // pred_region
              %s305 = ssub.s32 16, 1
              loop: start=0, step=1, limit=1
              $region115: #{transformer_block.4} parent=113 // loop_pre_header
                _
              $region116: #{transformer_block.4} parent=113 // loop_header
                %s307 = sphi 0, %s311
                %p308 = scmp.ge.s32.totalorder %s307, 1
                %s312 = sphi %s297, %s297
                %s313 = sphi %s293, %s293
              $region117: #{transformer_block.4} parent=113 // loop_header_branch
                %310 = sbr.rel (%p308) target = $region121
              $region118: #{transformer_block.4} parent=113 // loop_body
                %v314 = vld [vmem:[%s312] sm:%s305]
                %315 = vst [vmem:[%s313] sm:%s305] %v314
                %v316 = vld [vmem:[%s312 + $0x8] sm:%s305]
                %317 = vst [vmem:[%s313 + $0x4] sm:%s305] %v316
                %v318 = vld [vmem:[%s312 + $0x10] sm:%s305]
                %319 = vst [vmem:[%s313 + $0x8] sm:%s305] %v318
                %v320 = vld [vmem:[%s312 + $0x18] sm:%s305]
                %321 = vst [vmem:[%s313 + $0xc] sm:%s305] %v320
              $region119: #{transformer_block.4} parent=113 // loop_footer
                %s311 = sadd.s32 1, %s307
              $region120: #{transformer_block.4} parent=113 // loop_footer_branch
                %306 = sbr.rel target = $region116
              $region121: #{transformer_block.4} parent=113 // loop_exit
                _
            $region114: #{transformer_block.4} parent=105 // pred_fallthru
              _
          $region106: #{transformer_block.4} parent=101 // pred_fallthru
            _
          %350 = vnop
        $region102: #{transformer_block.4} parent=15 // pred_fallthru
          _
      $region16: #{transformer_block.4} parent=5 // pred_fallthru
        _
      %p351 = scmp.le.s32.totalorder 1, %s9
      %p352 = scmp.lt.s32.totalorder %s9, 9
      %p353 = pnand %p351, %p352
      %p354 = pneg %p353
      // Predicated region
      $region140: #{transformer_block.4} parent=5 // pred_check
        _
      $region141: #{transformer_block.4} parent=5 // pred_check_branch
        %356 = sbr.rel (%p353) target = $region143
      $region142: #{transformer_block.4} parent=5 // pred_region
        %s357 = ssub.s32 %s9, 1
        %s358 = sand.u32 %s43, 1
        %s359 = sand.u32 %s43, 1
        %s360 = smul.addr %s359, 16
        %s361 = scalar_lea.vmem [#allocation5], %s360
        // Predicated region
        $region144: #{transformer_block.4} parent=142 // pred_check
          %p362 = pneg %p56
        $region145: #{transformer_block.4} parent=142 // pred_check_branch
          %364 = sbr.rel (%p362) target = $region147
        $region146: #{transformer_block.4} parent=142 // pred_region
          _
        $region147: #{transformer_block.4} parent=142 // pred_fallthru
          _
        %s365 = sand.u32 %s71, 1
        %s366 = sand.u32 %s71, 1
        %s367 = smul.addr %s366, 16
        %s368 = scalar_lea.vmem [#allocation6], %s367
        // Predicated region
        $region148: #{transformer_block.4} parent=142 // pred_check
          %p369 = pneg %p84
        $region149: #{transformer_block.4} parent=142 // pred_check_branch
          %371 = sbr.rel (%p369) target = $region151
        $region150: #{transformer_block.4} parent=142 // pred_region
          _
        $region151: #{transformer_block.4} parent=142 // pred_fallthru
          _
        %s372 = sand.u32 %s99, 1
        %s373 = sand.u32 %s99, 1
        %s374 = smul.addr %s373, 16
        %s375 = scalar_lea.vmem [#allocation7], %s374
        // Predicated region
        $region152: #{transformer_block.4} parent=142 // pred_check
          %p376 = pneg %p112
        $region153: #{transformer_block.4} parent=142 // pred_check_branch
          %378 = sbr.rel (%p376) target = $region155
        $region154: #{transformer_block.4} parent=142 // pred_region
          _
        $region155: #{transformer_block.4} parent=142 // pred_fallthru
          _
        %s379 = sand.u32 %s43, 1
        %s380 = sand.u32 %s43, 1
        %s381 = smul.addr %s380, 16
        %s382 = scalar_lea.vmem [#allocation5], %s381
        %p383 = pneg %p56
        %p384 = pneg %p53
        %s385 = sand.u32 %s71, 1
        %s386 = sand.u32 %s71, 1
        %s387 = smul.addr %s386, 16
        %s388 = scalar_lea.vmem [#allocation6], %s387
        %p389 = pneg %p84
        %p390 = pneg %p81
        %s391 = sand.u32 %s99, 1
        %s392 = sand.u32 %s99, 1
        %s393 = smul.addr %s392, 16
        %s394 = scalar_lea.vmem [#allocation7], %s393
        %p395 = pneg %p112
        %p396 = pneg %p109
        %p397 = pneg %p140
        %p398 = pneg %p137
        %s399 = sand.u32 %s127, 1
        %s400 = sand.u32 %s127, 1
        %s401 = smul.addr %s400, 16
        %s402 = scalar_lea.vmem [#allocation8], %s401
        %p404 = scmp.eq.s32.totalorder %s21, 0
        // Predicated region
        $region156: #{transformer_block.4} parent=142 // pred_check
          %p405 = pneg %p404
        $region157: #{transformer_block.4} parent=142 // pred_check_branch
          %407 = sbr.rel (%p405) target = $region159
        $region158: #{transformer_block.4} parent=142 // pred_region
          %vm408 = vcmask 7168
          %409 = vst.msk [vmem:[#allocation2] sm:$0xff] %vm408, -1e+30
          %410 = vst.msk [vmem:[#allocation2 + $0x8] sm:$0xff] %vm408, -1e+30
          %411 = vst.msk [vmem:[#allocation2 + $0x10] sm:$0xff] %vm408, -1e+30
          %412 = vst.msk [vmem:[#allocation2 + $0x18] sm:$0xff] %vm408, -1e+30
          %413 = vst.msk [vmem:[#allocation3] sm:$0xff] %vm408, 0.0
          %414 = vst.msk [vmem:[#allocation3 + $0x8] sm:$0xff] %vm408, 0.0
          %415 = vst.msk [vmem:[#allocation3 + $0x10] sm:$0xff] %vm408, 0.0
          %416 = vst.msk [vmem:[#allocation3 + $0x18] sm:$0xff] %vm408, 0.0
          %vm417 = vcmask 64512
          %418 = vst.msk [vmem:[#allocation4] sm:$0xff] %vm417, 0.0
          %419 = vst.msk [vmem:[#allocation4 + $0x8] sm:$0xff] %vm417, 0.0
          %420 = vst.msk [vmem:[#allocation4 + $0x10] sm:$0xff] %vm417, 0.0
          %421 = vst.msk [vmem:[#allocation4 + $0x18] sm:$0xff] %vm417, 0.0
        $region159: #{transformer_block.4} parent=142 // pred_fallthru
          _
        %p422 = scmp.le.s32.totalorder %s21, %s20
        // Predicated region
        $region160: #{transformer_block.4} parent=142 // pred_check
          %p423 = pneg %p422
        $region161: #{transformer_block.4} parent=142 // pred_check_branch
          %425 = sbr.rel (%p423) target = $region163
        $region162: #{transformer_block.4} parent=142 // pred_region
          %v426 = vld [vmem:[%s361] sm:$0xf]
          %v427 = vld [vmem:[%s361 + $0x4] sm:$0xf]
          %v428 = vld [vmem:[%s361 + $0x8] sm:$0xf]
          %v429 = vld [vmem:[%s361 + $0xc] sm:$0xf]
          %v430 = vld [vmem:[%s368] sm:$0xf]
          %v431 = vld [vmem:[%s368 + $0x4] sm:$0xf]
          %v432 = vld [vmem:[%s368 + $0x8] sm:$0xf]
          %v433 = vld [vmem:[%s368 + $0xc] sm:$0xf]
          %vm434 = vcmask 64512
          %v436 = vsel %vm434, %v426, 0
          %v439 = vsel %vm434, %v430, 0
          %441 = vmatpush.bf16.xpose.msra.mxu0 0
          %442 = vmatpush.bf16.xpose.msra.mxu0 0
          %443 = vmatpush.bf16.xpose.msra.mxu0 0
          %444 = vmatpush.bf16.xpose.msra.mxu0 0
          %445 = vmatpush.bf16.xpose.msra.mxu0 0
          %446 = vmatpush.bf16.xpose.msra.mxu0 0
          %447 = vmatpush.bf16.xpose.msra.mxu0 0
          %448 = vmatpush.bf16.xpose.msra.mxu0 %v439
          %449 = vmatmul.bf16.gmra.mxu0 %v436
          %v450 = vpop.f32.mrf.mxu0
          %v451 = vadd.f32 0.0, %v450
          %v452 = vpop.f32.mrf.mxu0
          %453 = vdwg.mxu0
          %v455 = vsel %vm434, %v427, 0
          %v458 = vsel %vm434, %v431, 0
          %460 = vmatpush.bf16.xpose.msra.mxu0 0
          %461 = vmatpush.bf16.xpose.msra.mxu0 0
          %462 = vmatpush.bf16.xpose.msra.mxu0 0
          %463 = vmatpush.bf16.xpose.msra.mxu0 0
          %464 = vmatpush.bf16.xpose.msra.mxu0 0
          %465 = vmatpush.bf16.xpose.msra.mxu0 0
          %466 = vmatpush.bf16.xpose.msra.mxu0 0
          %467 = vmatpush.bf16.xpose.msra.mxu0 %v458
          %468 = vmatmul.bf16.gmra.mxu0 %v455
          %v469 = vpop.f32.mrf.mxu0
          %v470 = vadd.f32 0.0, %v469
          %v471 = vpop.f32.mrf.mxu0
          %472 = vdwg.mxu0
          %v474 = vsel %vm434, %v428, 0
          %v477 = vsel %vm434, %v432, 0
          %479 = vmatpush.bf16.xpose.msra.mxu0 0
          %480 = vmatpush.bf16.xpose.msra.mxu0 0
          %481 = vmatpush.bf16.xpose.msra.mxu0 0
          %482 = vmatpush.bf16.xpose.msra.mxu0 0
          %483 = vmatpush.bf16.xpose.msra.mxu0 0
          %484 = vmatpush.bf16.xpose.msra.mxu0 0
          %485 = vmatpush.bf16.xpose.msra.mxu0 0
          %486 = vmatpush.bf16.xpose.msra.mxu0 %v477
          %487 = vmatmul.bf16.gmra.mxu0 %v474
          %v488 = vpop.f32.mrf.mxu0
          %v489 = vadd.f32 0.0, %v488
          %v490 = vpop.f32.mrf.mxu0
          %491 = vdwg.mxu0
          %v493 = vsel %vm434, %v429, 0
          %v496 = vsel %vm434, %v433, 0
          %498 = vmatpush.bf16.xpose.msra.mxu0 0
          %499 = vmatpush.bf16.xpose.msra.mxu0 0
          %500 = vmatpush.bf16.xpose.msra.mxu0 0
          %501 = vmatpush.bf16.xpose.msra.mxu0 0
          %502 = vmatpush.bf16.xpose.msra.mxu0 0
          %503 = vmatpush.bf16.xpose.msra.mxu0 0
          %504 = vmatpush.bf16.xpose.msra.mxu0 0
          %505 = vmatpush.bf16.xpose.msra.mxu0 %v496
          %506 = vmatmul.bf16.gmra.mxu0 %v493
          %v507 = vpop.f32.mrf.mxu0
          %v508 = vadd.f32 0.0, %v507
          %v509 = vpop.f32.mrf.mxu0
          %510 = vdwg.mxu0
          %s511 = smul.u32 %s20, 8
          %v512 = vlaneseq
          %v513 = vshrl.u32 %v512, 7
          %v514 = vstv %s511
          %v515 = vadd.s32 %v514, %v513
          %s516 = smul.u32 %s21, 8
          %v517 = vlaneseq
          %v518 = vand.u32 %v517, 127
          %v519 = vstv %s516
          %v520 = vadd.s32 %v519, %v518
          %vm521 = vcmp.gt.s32.totalorder %v520, %v515
          %v522 = vsel %vm521, -1e+30, %v451
          %v523 = vsel %vm521, -1e+30, %v470
          %v524 = vsel %vm521, -1e+30, %v489
          %v525 = vsel %vm521, -1e+30, %v508
          %v526 = vld [vmem:[#allocation2] sm:$0xff]
          %v527 = vld [vmem:[#allocation2 + $0x8] sm:$0xff]
          %v528 = vld [vmem:[#allocation2 + $0x10] sm:$0xff]
          %v529 = vld [vmem:[#allocation2 + $0x18] sm:$0xff]
          %v530 = vsel %vm434, %v522, -inf
          %531 = vmax.xlane.f32.xlu0 %v530
          %v532 = vpop.xlane.xlu0 %531
          %v533 = vsel %vm434, %v523, -inf
          %534 = vmax.xlane.f32.xlu0 %v533
          %v535 = vpop.xlane.xlu0 %534
          %v536 = vsel %vm434, %v524, -inf
          %537 = vmax.xlane.f32.xlu0 %v536
          %v538 = vpop.xlane.xlu0 %537
          %v539 = vsel %vm434, %v525, -inf
          %540 = vmax.xlane.f32.xlu0 %v539
          %v541 = vpop.xlane.xlu0 %540
          %v542 = vmax.f32 %v526, %v532
          %v543 = vmax.f32 %v527, %v535
          %v544 = vmax.f32 %v528, %v538
          %v545 = vmax.f32 %v529, %v541
          %v546 = vsub.f32 %v526, %v542
          %v547 = vsub.f32 %v527, %v543
          %v548 = vsub.f32 %v528, %v544
          %v549 = vsub.f32 %v529, %v545
          %v550 = vmul.f32 %v546, 1.442695
          %v551 = vpow.pop %v550
          %v552 = vmul.f32 %v547, 1.442695
          %v553 = vpow.pop %v552
          %v554 = vmul.f32 %v548, 1.442695
          %v555 = vpow.pop %v554
          %v556 = vmul.f32 %v549, 1.442695
          %v557 = vpow.pop %v556
          %559 = vset.pattern.permute.xlu0 0
          %560 = vperm.xlu0 %559, %v542
          %v561 = vpop.permute.xlu0 %560
          %564 = vset.pattern.permute.xlu0 0
          %565 = vperm.xlu0 %564, %v543
          %v566 = vpop.permute.xlu0 %565
          %569 = vset.pattern.permute.xlu0 0
          %570 = vperm.xlu0 %569, %v544
          %v571 = vpop.permute.xlu0 %570
          %574 = vset.pattern.permute.xlu0 0
          %575 = vperm.xlu0 %574, %v545
          %v576 = vpop.permute.xlu0 %575
          %v578 = vsub.f32 %v522, %v561
          %v579 = vsub.f32 %v523, %v566
          %v580 = vsub.f32 %v524, %v571
          %v581 = vsub.f32 %v525, %v576
          %v582 = vmul.f32 %v578, 1.442695
          %v583 = vpow.pop %v582
          %v584 = vmul.f32 %v579, 1.442695
          %v585 = vpow.pop %v584
          %v586 = vmul.f32 %v580, 1.442695
          %v587 = vpow.pop %v586
          %v588 = vmul.f32 %v581, 1.442695
          %v589 = vpow.pop %v588
          %v590 = vld [vmem:[#allocation3] sm:$0xff]
          %v591 = vld [vmem:[#allocation3 + $0x8] sm:$0xff]
          %v592 = vld [vmem:[#allocation3 + $0x10] sm:$0xff]
          %v593 = vld [vmem:[#allocation3 + $0x18] sm:$0xff]
          %v594 = vmul.f32 %v551, %v590
          %v595 = vmul.f32 %v553, %v591
          %v596 = vmul.f32 %v555, %v592
          %v597 = vmul.f32 %v557, %v593
          %v598 = vsel %vm434, %v583, 0.0
          %599 = vadd.xlane.f32.xlu0 %v598
          %v600 = vpop.xlane.xlu0 %599
          %v601 = vsel %vm434, %v585, 0.0
          %602 = vadd.xlane.f32.xlu0 %v601
          %v603 = vpop.xlane.xlu0 %602
          %v604 = vsel %vm434, %v587, 0.0
          %605 = vadd.xlane.f32.xlu0 %v604
          %v606 = vpop.xlane.xlu0 %605
          %v607 = vsel %vm434, %v589, 0.0
          %608 = vadd.xlane.f32.xlu0 %v607
          %v609 = vpop.xlane.xlu0 %608
          %v610 = vadd.f32 %v594, %v600
          %v611 = vadd.f32 %v595, %v603
          %v612 = vadd.f32 %v596, %v606
          %v613 = vadd.f32 %v597, %v609
          %vm614 = vcmask 7168
          %615 = vst.msk [vmem:[#allocation3] sm:$0xff] %vm614, %v610
          %616 = vst.msk [vmem:[#allocation3 + $0x8] sm:$0xff] %vm614, %v611
          %617 = vst.msk [vmem:[#allocation3 + $0x10] sm:$0xff] %vm614, %v612
          %618 = vst.msk [vmem:[#allocation3 + $0x18] sm:$0xff] %vm614, %v613
          %v619 = vld [vmem:[#allocation4] sm:$0xff]
          %v620 = vld [vmem:[#allocation4 + $0x8] sm:$0xff]
          %v621 = vld [vmem:[#allocation4 + $0x10] sm:$0xff]
          %v622 = vld [vmem:[#allocation4 + $0x18] sm:$0xff]
          %624 = vset.pattern.permute.xlu0 0
          %625 = vperm.xlu0 %624, %v551
          %v626 = vpop.permute.xlu0 %625
          %629 = vset.pattern.permute.xlu0 0
          %630 = vperm.xlu0 %629, %v553
          %v631 = vpop.permute.xlu0 %630
          %634 = vset.pattern.permute.xlu0 0
          %635 = vperm.xlu0 %634, %v555
          %v636 = vpop.permute.xlu0 %635
          %639 = vset.pattern.permute.xlu0 0
          %640 = vperm.xlu0 %639, %v557
          %v641 = vpop.permute.xlu0 %640
          %v643 = vmul.f32 %v626, %v619
          %v644 = vmul.f32 %v631, %v620
          %v645 = vmul.f32 %v636, %v621
          %v646 = vmul.f32 %v641, %v622
          %v647 = vpack.c.bf16 %v583, %v583
          %v648 = vpack.c.bf16 %v585, %v585
          %v649 = vpack.c.bf16 %v587, %v587
          %v650 = vpack.c.bf16 %v589, %v589
          %v651 = vld [vmem:[%s375] sm:$0xf]
          %v652 = vld [vmem:[%s375 + $0x4] sm:$0xf]
          %v653 = vld [vmem:[%s375 + $0x8] sm:$0xf]
          %v654 = vld [vmem:[%s375 + $0xc] sm:$0xf]
          %v656 = vsel %vm434, %v647, 0
          %vm658 = vcmask 1043456
          %v660 = vsel %vm658, %v651, 0
          %662 = vmatpush.bf16.msra.mxu0 0
          %663 = vmatpush.bf16.msra.mxu0 0
          %664 = vmatpush.bf16.msra.mxu0 0
          %665 = vmatpush.bf16.msra.mxu0 0
          %666 = vmatpush.bf16.msra.mxu0 0
          %667 = vmatpush.bf16.msra.mxu0 0
          %668 = vmatpush.bf16.msra.mxu0 0
          %669 = vmatpush.bf16.msra.mxu0 %v660
          %670 = vmatmul.bf16.gmra.mxu0 %v656
          %v671 = vpop.f32.mrf.mxu0
          %v672 = vadd.f32 0.0, %v671
          %v673 = vpop.f32.mrf.mxu0
          %674 = vdwg.mxu0
          %v676 = vsel %vm434, %v648, 0
          %v679 = vsel %vm658, %v652, 0
          %681 = vmatpush.bf16.msra.mxu0 0
          %682 = vmatpush.bf16.msra.mxu0 0
          %683 = vmatpush.bf16.msra.mxu0 0
          %684 = vmatpush.bf16.msra.mxu0 0
          %685 = vmatpush.bf16.msra.mxu0 0
          %686 = vmatpush.bf16.msra.mxu0 0
          %687 = vmatpush.bf16.msra.mxu0 0
          %688 = vmatpush.bf16.msra.mxu0 %v679
          %689 = vmatmul.bf16.gmra.mxu0 %v676
          %v690 = vpop.f32.mrf.mxu0
          %v691 = vadd.f32 0.0, %v690
          %v692 = vpop.f32.mrf.mxu0
          %693 = vdwg.mxu0
          %v695 = vsel %vm434, %v649, 0
          %v698 = vsel %vm658, %v653, 0
          %700 = vmatpush.bf16.msra.mxu0 0
          %701 = vmatpush.bf16.msra.mxu0 0
          %702 = vmatpush.bf16.msra.mxu0 0
          %703 = vmatpush.bf16.msra.mxu0 0
          %704 = vmatpush.bf16.msra.mxu0 0
          %705 = vmatpush.bf16.msra.mxu0 0
          %706 = vmatpush.bf16.msra.mxu0 0
          %707 = vmatpush.bf16.msra.mxu0 %v698
          %708 = vmatmul.bf16.gmra.mxu0 %v695
          %v709 = vpop.f32.mrf.mxu0
          %v710 = vadd.f32 0.0, %v709
          %v711 = vpop.f32.mrf.mxu0
          %712 = vdwg.mxu0
          %v714 = vsel %vm434, %v650, 0
          %v717 = vsel %vm658, %v654, 0
          %719 = vmatpush.bf16.msra.mxu0 0
          %720 = vmatpush.bf16.msra.mxu0 0
          %721 = vmatpush.bf16.msra.mxu0 0
          %722 = vmatpush.bf16.msra.mxu0 0
          %723 = vmatpush.bf16.msra.mxu0 0
          %724 = vmatpush.bf16.msra.mxu0 0
          %725 = vmatpush.bf16.msra.mxu0 0
          %726 = vmatpush.bf16.msra.mxu0 %v717
          %727 = vmatmul.bf16.gmra.mxu0 %v714
          %v728 = vpop.f32.mrf.mxu0
          %v729 = vadd.f32 0.0, %v728
          %v730 = vpop.f32.mrf.mxu0
          %731 = vdwg.mxu0
          %v732 = vadd.f32 %v643, %v672
          %v733 = vadd.f32 %v644, %v691
          %v734 = vadd.f32 %v645, %v710
          %v735 = vadd.f32 %v646, %v729
          %736 = vst.msk [vmem:[#allocation4] sm:$0xff] %vm434, %v732
          %737 = vst.msk [vmem:[#allocation4 + $0x8] sm:$0xff] %vm434, %v733
          %738 = vst.msk [vmem:[#allocation4 + $0x10] sm:$0xff] %vm434, %v734
          %739 = vst.msk [vmem:[#allocation4 + $0x18] sm:$0xff] %vm434, %v735
          %740 = vst.msk [vmem:[#allocation2] sm:$0xff] %vm614, %v542
          %741 = vst.msk [vmem:[#allocation2 + $0x8] sm:$0xff] %vm614, %v543
          %742 = vst.msk [vmem:[#allocation2 + $0x10] sm:$0xff] %vm614, %v544
          %743 = vst.msk [vmem:[#allocation2 + $0x18] sm:$0xff] %vm614, %v545
        $region163: #{transformer_block.4} parent=142 // pred_fallthru
          _
        %p744 = scmp.eq.s32.totalorder %s21, 1
        // Predicated region
        $region164: #{transformer_block.4} parent=142 // pred_check
          %p745 = pneg %p744
        $region165: #{transformer_block.4} parent=142 // pred_check_branch
          %747 = sbr.rel (%p745) target = $region167
        $region166: #{transformer_block.4} parent=142 // pred_region
          %v748 = vld [vmem:[#allocation3] sm:$0xff]
          %v749 = vld [vmem:[#allocation3 + $0x8] sm:$0xff]
          %v750 = vld [vmem:[#allocation3 + $0x10] sm:$0xff]
          %v751 = vld [vmem:[#allocation3 + $0x18] sm:$0xff]
          %v752 = vrcp.pop %v748
          %v753 = vrcp.pop %v749
          %v754 = vrcp.pop %v750
          %v755 = vrcp.pop %v751
          %v756 = vld [vmem:[#allocation4] sm:$0xff]
          %v757 = vld [vmem:[#allocation4 + $0x8] sm:$0xff]
          %v758 = vld [vmem:[#allocation4 + $0x10] sm:$0xff]
          %v759 = vld [vmem:[#allocation4 + $0x18] sm:$0xff]
          %761 = vset.pattern.permute.xlu0 0
          %762 = vperm.xlu0 %761, %v752
          %v763 = vpop.permute.xlu0 %762
          %766 = vset.pattern.permute.xlu0 0
          %767 = vperm.xlu0 %766, %v753
          %v768 = vpop.permute.xlu0 %767
          %771 = vset.pattern.permute.xlu0 0
          %772 = vperm.xlu0 %771, %v754
          %v773 = vpop.permute.xlu0 %772
          %776 = vset.pattern.permute.xlu0 0
          %777 = vperm.xlu0 %776, %v755
          %v778 = vpop.permute.xlu0 %777
          %v780 = vmul.f32 %v756, %v763
          %v781 = vmul.f32 %v757, %v768
          %v782 = vmul.f32 %v758, %v773
          %v783 = vmul.f32 %v759, %v778
          %v784 = vpack.c.bf16 %v780, %v780
          %v785 = vpack.c.bf16 %v781, %v781
          %v786 = vpack.c.bf16 %v782, %v782
          %v787 = vpack.c.bf16 %v783, %v783
          %vm788 = vcmask 60416
          %789 = vst.msk [vmem:[%s402] sm:$0xf] %vm788, %v784
          %790 = vst.msk [vmem:[%s402 + $0x4] sm:$0xf] %vm788, %v785
          %791 = vst.msk [vmem:[%s402 + $0x8] sm:$0xf] %vm788, %v786
          %792 = vst.msk [vmem:[%s402 + $0xc] sm:$0xf] %vm788, %v787
        $region167: #{transformer_block.4} parent=142 // pred_fallthru
          _
        %s793 = sand.u32 %s127, 1
        %s794 = sand.u32 %s127, 1
        %s795 = smul.addr %s794, 16
        %s796 = scalar_lea.vmem [#allocation8], %s795
        // Predicated region
        $region168: #{transformer_block.4} parent=142 // pred_check
          %p797 = pneg %p137
        $region169: #{transformer_block.4} parent=142 // pred_check_branch
          %799 = sbr.rel (%p797) target = $region171
        $region170: #{transformer_block.4} parent=142 // pred_region
          %s800 = smul.addr %s19, 8
          %s801 = sadd.s32 %s20, %s800
          %s802 = smul.addr %s801, 4
          %s803 = scalar_lea.vmem %s3, %s802
          // Predicated region
          $region172: #{transformer_block.4} parent=170 // pred_check
            _
          $region173: #{transformer_block.4} parent=170 // pred_check_branch
            %805 = sbr.rel (0) target = $region175
          $region174: #{transformer_block.4} parent=170 // pred_region
            // Predicated region
            $region176: #{transformer_block.4} parent=174 // pred_check
              _
            $region177: #{transformer_block.4} parent=174 // pred_check_branch
              %807 = sbr.rel target = $region179
            $region178: #{transformer_block.4} parent=174 // pred_region
              // Predicated region
              $region191: #{transformer_block.4} parent=178 // pred_check
                _
              $region192: #{transformer_block.4} parent=178 // pred_check_branch
                %829 = sbr.rel (0) target = $region194
              $region193: #{transformer_block.4} parent=178 // pred_region
                loop: start=0, step=1, limit=1
                $region195: #{transformer_block.4} parent=193 // loop_pre_header
                  _
                $region196: #{transformer_block.4} parent=193 // loop_header
                  %s831 = sphi 0, %s835
                  %p832 = scmp.ge.s32.totalorder %s831, 1
                  %s836 = sphi %s796, %s796
                  %s837 = sphi %s803, %s803
                $region197: #{transformer_block.4} parent=193 // loop_header_branch
                  %834 = sbr.rel (%p832) target = $region201
                $region198: #{transformer_block.4} parent=193 // loop_body
                  _
                $region199: #{transformer_block.4} parent=193 // loop_footer
                  %s835 = sadd.s32 1, %s831
                $region200: #{transformer_block.4} parent=193 // loop_footer_branch
                  %830 = sbr.rel target = $region196
                $region201: #{transformer_block.4} parent=193 // loop_exit
                  _
                %s839 = ssub.s32 16, 1
                loop: start=0, step=1, limit=1
                $region202: #{transformer_block.4} parent=193 // loop_pre_header
                  _
                $region203: #{transformer_block.4} parent=193 // loop_header
                  %s841 = sphi 0, %s845
                  %p842 = scmp.ge.s32.totalorder %s841, 1
                  %s846 = sphi %s796, %s796
                  %s847 = sphi %s803, %s803
                $region204: #{transformer_block.4} parent=193 // loop_header_branch
                  %844 = sbr.rel (%p842) target = $region208
                $region205: #{transformer_block.4} parent=193 // loop_body
                  %v848 = vld [vmem:[%s846] sm:%s839]
                  %849 = vst [vmem:[%s847] sm:%s839] %v848
                  %v850 = vld [vmem:[%s846 + $0x4] sm:%s839]
                  %851 = vst [vmem:[%s847 + $0x8] sm:%s839] %v850
                  %v852 = vld [vmem:[%s846 + $0x8] sm:%s839]
                  %853 = vst [vmem:[%s847 + $0x10] sm:%s839] %v852
                  %v854 = vld [vmem:[%s846 + $0xc] sm:%s839]
                  %855 = vst [vmem:[%s847 + $0x18] sm:%s839] %v854
                $region206: #{transformer_block.4} parent=193 // loop_footer
                  %s845 = sadd.s32 1, %s841
                $region207: #{transformer_block.4} parent=193 // loop_footer_branch
                  %840 = sbr.rel target = $region203
                $region208: #{transformer_block.4} parent=193 // loop_exit
                  _
              $region194: #{transformer_block.4} parent=178 // pred_fallthru
                _
            $region179: #{transformer_block.4} parent=174 // pred_fallthru
              _
            // Predicated region
            $region180: #{transformer_block.4} parent=174 // pred_check
              _
            $region181: #{transformer_block.4} parent=174 // pred_check_branch
              %809 = sbr.rel (0) target = $region183
            $region182: #{transformer_block.4} parent=174 // pred_region
              %s811 = ssub.s32 16, 1
              loop: start=0, step=1, limit=1
              $region184: #{transformer_block.4} parent=182 // loop_pre_header
                _
              $region185: #{transformer_block.4} parent=182 // loop_header
                %s813 = sphi 0, %s817
                %p814 = scmp.ge.s32.totalorder %s813, 1
                %s818 = sphi %s796, %s796
                %s819 = sphi %s803, %s803
              $region186: #{transformer_block.4} parent=182 // loop_header_branch
                %816 = sbr.rel (%p814) target = $region190
              $region187: #{transformer_block.4} parent=182 // loop_body
                %v820 = vld [vmem:[%s818] sm:%s811]
                %821 = vst [vmem:[%s819] sm:%s811] %v820
                %v822 = vld [vmem:[%s818 + $0x4] sm:%s811]
                %823 = vst [vmem:[%s819 + $0x8] sm:%s811] %v822
                %v824 = vld [vmem:[%s818 + $0x8] sm:%s811]
                %825 = vst [vmem:[%s819 + $0x10] sm:%s811] %v824
                %v826 = vld [vmem:[%s818 + $0xc] sm:%s811]
                %827 = vst [vmem:[%s819 + $0x18] sm:%s811] %v826
              $region188: #{transformer_block.4} parent=182 // loop_footer
                %s817 = sadd.s32 1, %s813
              $region189: #{transformer_block.4} parent=182 // loop_footer_branch
                %812 = sbr.rel target = $region185
              $region190: #{transformer_block.4} parent=182 // loop_exit
                _
            $region183: #{transformer_block.4} parent=174 // pred_fallthru
              _
          $region175: #{transformer_block.4} parent=170 // pred_fallthru
            _
          %856 = vnop
        $region171: #{transformer_block.4} parent=142 // pred_fallthru
          _
      $region143: #{transformer_block.4} parent=5 // pred_fallthru
        _
      %p857 = scmp.le.s32.totalorder 2, %s9
      // Predicated region
      $region209: #{transformer_block.4} parent=5 // pred_check
        %p858 = pneg %p857
      $region210: #{transformer_block.4} parent=5 // pred_check_branch
        %860 = sbr.rel (%p858) target = $region212
      $region211: #{transformer_block.4} parent=5 // pred_region
        %s861 = ssub.s32 %s9, 2
        // Predicated region
        $region213: #{transformer_block.4} parent=211 // pred_check
          %p862 = pneg %p143
        $region214: #{transformer_block.4} parent=211 // pred_check_branch
          %864 = sbr.rel (%p862) target = $region216
        $region215: #{transformer_block.4} parent=211 // pred_region
          %s865 = sand.u32 %s128, 1
          %s866 = sand.u32 %s128, 1
          %s867 = smul.addr %s866, 16
          %s868 = scalar_lea.vmem [#allocation8], %s867
        $region216: #{transformer_block.4} parent=211 // pred_fallthru
          _
      $region212: #{transformer_block.4} parent=5 // pred_fallthru
        _
    $region6: #{transformer_block.4} parent=1 // loop_footer
      %s13 = sadd.s32 1, %s9
    $region7: #{transformer_block.4} parent=1 // loop_footer_branch
      %8 = sbr.rel target = $region3
    $region8: #{transformer_block.4} parent=1 // loop_exit
      _

</llo_original>
